<compile_context>
chip_gen: v7x
topology: tpu7x:2x2x1
jax: 0.10.0
libtpu: 0.0.40
codegen_flags: <defaults>
</compile_context>

<pallas_src>
import functools

import numpy as np
import jax
import jax.numpy as jnp
from jax import lax
from jax.experimental import pallas as pl
from jax.experimental.pallas import tpu as pltpu

FFT_SIZE = 512
HOP_SIZE = 256
NFREQ = FFT_SIZE // 2 + 1          # 257 one-sided bins
HALF_PAD = 384                     # 257 padded up to 3*128 (lane aligned)
SPEC_PAD = 2 * HALF_PAD            # 768 = [re | im], each 384 lanes
EPS = 1e-8


def _make_bases():
    """DFT analysis/synthesis bases, zero-padded to lane-aligned widths.

    fwd_T: (512, 768) -> frames @ fwd_T = [re | im] spectrum (padded bins = 0)
    inv:   (768, 512) windowed one-sided iDFT with the WOLA denominator
           (1 / window-sum-square) folded into its columns; padded-bin rows
           are zero, so the lane padding is numerically exact.
    """
    n = np.arange(FFT_SIZE, dtype=np.float64)
    k = np.arange(NFREQ, dtype=np.float64)
    ang = 2.0 * np.pi * np.outer(k, n) / FFT_SIZE              # (257, 512)
    win = 0.5 * (1.0 - np.cos(2.0 * np.pi * n / FFT_SIZE))     # periodic Hann

    fwd = np.zeros((SPEC_PAD, FFT_SIZE), np.float64)
    fwd[:NFREQ] = np.cos(ang) * win
    fwd[HALF_PAD:HALF_PAD + NFREQ] = -np.sin(ang) * win

    ck = np.where((k == 0) | (k == FFT_SIZE // 2), 1.0, 2.0)[:, None]
    inv = np.zeros((SPEC_PAD, FFT_SIZE), np.float64)
    inv[:NFREQ] = ck * np.cos(ang) / FFT_SIZE * win
    inv[HALF_PAD:HALF_PAD + NFREQ] = -ck * np.sin(ang) / FFT_SIZE * win

    # window-sum-square at 50% overlap (in [0.5, 1]); fold 1/wss into synthesis
    wss = win[:HOP_SIZE] ** 2 + win[HOP_SIZE:] ** 2            # (256,)
    inv[:, :HOP_SIZE] /= wss
    inv[:, HOP_SIZE:] /= wss

    return (jnp.asarray(fwd.T, jnp.bfloat16),    # (512, 768)
            jnp.asarray(inv, jnp.bfloat16))      # (768, 512)


# ------------------------------ fused kernel --------------------------------

def _fused_kernel(frames_ref, pred_ref, fwd_ref, inv_ref,
                  cy_out_ref, ce_out_ref,
                  carry_ref, cy_acc, ce_acc, *, tf, nk):
    t = pl.program_id(1)

    @pl.when(t == 0)
    def _init():
        carry_ref[...] = jnp.zeros_like(carry_ref)
        cy_acc[...] = jnp.zeros_like(cy_acc)
        ce_acc[...] = jnp.zeros_like(ce_acc)

    frames = frames_ref[0]                                         # (tf, 512) bf16
    spec = jnp.dot(frames, fwd_ref[...],
                   preferred_element_type=jnp.float32)             # (tf, 768) f32
    # Reference does mag/phase -> back to re/im, which is the identity map
    # (mag*cos(atan2(im,re)) == re); feed the spectrum straight to the iDFT.
    iframes = jnp.dot(spec.astype(jnp.bfloat16), inv_ref[...],
                      preferred_element_type=jnp.float32)          # (tf, 512) f32

    fh = iframes[:, :HOP_SIZE]            # first halves  (already / wss)
    sh = iframes[:, HOP_SIZE:]            # second halves (already / wss)

    # WOLA: kept[j] = fh[j+1] + sh[j]; row r of this tile is global segment
    # j = t*tf + r - 1, so shift sh down by one row, carrying across tiles.
    sh_prev = jnp.concatenate([carry_ref[...], sh[:tf - 1, :]], axis=0)
    carry_ref[...] = sh[tf - 1:tf, :]

    g = t * tf + lax.broadcasted_iota(jnp.int32, (tf, 1), 0)
    valid = jnp.logical_and(g >= 1, g <= nk)
    recon = jnp.where(valid, fh + sh_prev, 0.0)                    # (tf, 256)

    err = pred_ref[0] - recon            # pred rows are 0 where invalid
    cy_acc[...] = cy_acc[...] + jnp.sum(recon * recon)
    ce_acc[...] = ce_acc[...] + jnp.sum(err * err)

    @pl.when(t == pl.num_programs(1) - 1)
    def _finalize():
        ones = jnp.ones((1, 128), jnp.float32)
        cy_out_ref[...] = (cy_acc[...] * ones).reshape(1, 1, 128)
        ce_out_ref[...] = (ce_acc[...] * ones).reshape(1, 1, 128)


# ------------------------------- Loss forward --------------------------------

def loss_forward(pred_waves, target_waves, bases):
    fwd_t, inv = bases

    if target_waves.dtype == jnp.int16:
        target_waves = target_waves.astype(jnp.float32) / 32768.0
    target = target_waves.astype(jnp.float32)
    pred = pred_waves.astype(jnp.float32)

    B, T = target.shape
    assert T % HOP_SIZE == 0, "time length must be a multiple of hop_size"
    nk = T // HOP_SIZE                     # kept WOLA segments
    nf = nk + 1                            # analysis frames

    tf = min(256, ((nf + 15) // 16) * 16)  # frame rows / tile (bf16 sublane mult)
    nt = pl.cdiv(nf, tf)
    nf_pad = nt * tf

    # --- framing: reflect pad by hop, 50% overlap; zero-pad to tile multiple ---
    padded = jnp.pad(target, ((0, 0), (HOP_SIZE, HOP_SIZE)), mode="reflect")
    segs = padded.reshape(B, nk + 2, HOP_SIZE)
    frames = jnp.concatenate([segs[:, :-1, :], segs[:, 1:, :]], axis=-1)   # (B, nf, 512)
    frames = jnp.pad(frames, ((0, 0), (0, nf_pad - nf), (0, 0))).astype(jnp.bfloat16)

    # pred segment for kept index j sits at row j+1 (row 0 / tail rows masked)
    pred_seg = jnp.zeros((B, nf_pad, HOP_SIZE), jnp.float32)
    pred_seg = pred_seg.at[:, 1:nk + 1, :].set(pred.reshape(B, nk, HOP_SIZE))

    flops = 4 * B * nf_pad * FFT_SIZE * SPEC_PAD          # two MXU matmuls / frame
    bytes_accessed = (frames.size * 2 + pred_seg.size * 4 +
                      fwd_t.size * 2 + inv.size * 2 + 2 * B * 128 * 4)

    cy_out, ce_out = pl.pallas_call(
        functools.partial(_fused_kernel, tf=tf, nk=nk),
        out_shape=(jax.ShapeDtypeStruct((B, 1, 128), jnp.float32),
                   jax.ShapeDtypeStruct((B, 1, 128), jnp.float32)),
        grid=(B, nt),
        in_specs=[
            pl.BlockSpec((1, tf, FFT_SIZE), lambda b, t: (b, t, 0)),     # frames
            pl.BlockSpec((1, tf, HOP_SIZE), lambda b, t: (b, t, 0)),     # pred segs
            pl.BlockSpec((FFT_SIZE, SPEC_PAD), lambda b, t: (0, 0)),     # fwd basis
            pl.BlockSpec((SPEC_PAD, FFT_SIZE), lambda b, t: (0, 0)),     # inv basis
        ],
        out_specs=(
            pl.BlockSpec((1, 1, 128), lambda b, t: (b, 0, 0)),
            pl.BlockSpec((1, 1, 128), lambda b, t: (b, 0, 0)),
        ),
        scratch_shapes=[
            pltpu.VMEM((1, HOP_SIZE), jnp.float32),   # carried second half
            pltpu.VMEM((1, 1), jnp.float32),          # sum(recon^2)
            pltpu.VMEM((1, 1), jnp.float32),          # sum((pred - recon)^2)
        ],
        compiler_params=pltpu.CompilerParams(
            dimension_semantics=("parallel", "arbitrary")),
        cost_estimate=pl.CostEstimate(flops=flops, transcendentals=0,
                                      bytes_accessed=bytes_accessed),
    )(frames, pred_seg, fwd_t, inv)

    cy = cy_out[:, 0, 0] + EPS            # corr(recon, recon)
    ce = ce_out[:, 0, 0] + EPS            # corr(err, err)
    sdr = -10.0 * (jnp.log10(cy) - jnp.log10(ce))
    return jnp.mean(sdr)


if __name__ == "__main__":
    key = jax.random.PRNGKey(0)
    k1, k2 = jax.random.split(key)

    B, T = 2, 2048
    target = 0.1 * jax.random.normal(k1, (B, T), dtype=jnp.float32)
    pred = target + 0.05 * jax.random.normal(k2, (B, T), dtype=jnp.float32)

    bases = _make_bases()
    loss = jax.jit(lambda p, t: loss_forward(p, t, bases))(pred, target)
    jax.block_until_ready(loss)

    assert loss.shape == () and bool(jnp.isfinite(loss))
    print("KERNEL_OK")
</pallas_src>

<mosaic_0001>
module attributes {stable_mosaic.version = 11 : i64} {
  func.func @_fused_kernel(%arg0: i32, %arg1: i32, %arg2: memref<1x16x512xbf16, #tpu.memory_space<vmem>>, %arg3: memref<1x16x256xf32, #tpu.memory_space<vmem>>, %arg4: memref<512x768xbf16, #tpu.memory_space<vmem>>, %arg5: memref<768x512xbf16, #tpu.memory_space<vmem>>, %arg6: memref<1x1x128xf32, #tpu.memory_space<vmem>>, %arg7: memref<1x1x128xf32, #tpu.memory_space<vmem>>, %arg8: memref<1x256xf32, #tpu.memory_space<vmem>>, %arg9: memref<1x1xf32, #tpu.memory_space<vmem>>, %arg10: memref<1x1xf32, #tpu.memory_space<vmem>>) attributes {dimension_semantics = [#tpu.dimension_semantics<parallel>, #tpu.dimension_semantics<arbitrary>], iteration_bounds = array<i64: 2, 1>, scalar_prefetch = 0 : i64, scratch_operands = 3 : i64, tpu.core_type = #tpu.core_type<tc>, window_params = [{transform_indices = @transform_0, window_bounds = array<i64: 1, 16, 512>}, {transform_indices = @transform_1, window_bounds = array<i64: 1, 16, 256>}, {pipeline_mode = #tpu.pipeline_mode<synchronous>, transform_indices = @transform_2, window_bounds = array<i64: 512, 768>}, {pipeline_mode = #tpu.pipeline_mode<synchronous>, transform_indices = @transform_3, window_bounds = array<i64: 768, 512>}, {transform_indices = @transform_4, window_bounds = array<i64: 1, 1, 128>}, {transform_indices = @transform_5, window_bounds = array<i64: 1, 1, 128>}]} {
    %c0_i32 = arith.constant 0 : i32
    %0 = arith.cmpi eq, %arg1, %c0_i32 : i32
    %1 = arith.extui %0 : i1 to i32
    %c0_i32_0 = arith.constant 0 : i32
    %2 = arith.cmpi ne, %1, %c0_i32_0 : i32
    scf.if %2 {
      %cst_28 = arith.constant 0.000000e+00 : f32
      %55 = vector.broadcast %cst_28 : f32 to vector<1x256xf32>
      %c0_29 = arith.constant 0 : index
      %c0_30 = arith.constant 0 : index
      %56 = vector.load %arg8[%c0_29, %c0_30] : memref<1x256xf32, #tpu.memory_space<vmem>>, vector<1x256xf32>
      tpu.vector_store %arg8[%c0_29, %c0_30], %55 {strides = array<i32>} : memref<1x256xf32, #tpu.memory_space<vmem>>, vector<1x256xf32>,
      %cst_31 = arith.constant 0.000000e+00 : f32
      %57 = vector.broadcast %cst_31 : f32 to vector<1x1xf32>
      %c0_32 = arith.constant 0 : index
      %c0_33 = arith.constant 0 : index
      %58 = vector.load %arg9[%c0_32, %c0_33] : memref<1x1xf32, #tpu.memory_space<vmem>>, vector<1x1xf32>
      tpu.vector_store %arg9[%c0_32, %c0_33], %57 {strides = array<i32>} : memref<1x1xf32, #tpu.memory_space<vmem>>, vector<1x1xf32>,
      %cst_34 = arith.constant 0.000000e+00 : f32
      %59 = vector.broadcast %cst_34 : f32 to vector<1x1xf32>
      %c0_35 = arith.constant 0 : index
      %c0_36 = arith.constant 0 : index
      %60 = vector.load %arg10[%c0_35, %c0_36] : memref<1x1xf32, #tpu.memory_space<vmem>>, vector<1x1xf32>
      tpu.vector_store %arg10[%c0_35, %c0_36], %59 {strides = array<i32>} : memref<1x1xf32, #tpu.memory_space<vmem>>, vector<1x1xf32>,
    } else {
    }
    %c0 = arith.constant 0 : index
    %c0_1 = arith.constant 0 : index
    %c0_2 = arith.constant 0 : index
    %3 = vector.load %arg2[%c0, %c0_1, %c0_2] : memref<1x16x512xbf16, #tpu.memory_space<vmem>>, vector<1x16x512xbf16>
    %4 = vector.shape_cast %3 : vector<1x16x512xbf16> to vector<16x512xbf16>
    %c0_3 = arith.constant 0 : index
    %c0_4 = arith.constant 0 : index
    %5 = vector.load %arg4[%c0_3, %c0_4] : memref<512x768xbf16, #tpu.memory_space<vmem>>, vector<512x768xbf16>
    %cst = arith.constant dense<0.000000e+00> : vector<16x768xf32>
    %6 = tpu.matmul %4, %5, %cst {dimension_numbers = #tpu.dot_dimension_numbers<[1], [0], [0], [1], [0, 0, 1, 1], [], []>} : vector<16x512xbf16>, vector<512x768xbf16>, vector<16x768xf32> -> vector<16x768xf32>
    %7 = arith.truncf %6 : vector<16x768xf32> to vector<16x768xbf16>
    %c0_5 = arith.constant 0 : index
    %c0_6 = arith.constant 0 : index
    %8 = vector.load %arg5[%c0_5, %c0_6] : memref<768x512xbf16, #tpu.memory_space<vmem>>, vector<768x512xbf16>
    %cst_7 = arith.constant dense<0.000000e+00> : vector<16x512xf32>
    %9 = tpu.matmul %7, %8, %cst_7 {dimension_numbers = #tpu.dot_dimension_numbers<[1], [0], [0], [1], [0, 0, 1, 1], [], []>} : vector<16x768xbf16>, vector<768x512xbf16>, vector<16x512xf32> -> vector<16x512xf32>
    %10 = vector.extract_strided_slice %9 {offsets = [0, 0], sizes = [16, 256], strides = [1, 1]} : vector<16x512xf32> to vector<16x256xf32>
    %11 = vector.extract_strided_slice %9 {offsets = [0, 256], sizes = [16, 256], strides = [1, 1]} : vector<16x512xf32> to vector<16x256xf32>
    %c0_8 = arith.constant 0 : index
    %c0_9 = arith.constant 0 : index
    %12 = vector.load %arg8[%c0_8, %c0_9] : memref<1x256xf32, #tpu.memory_space<vmem>>, vector<1x256xf32>
    %13 = vector.extract_strided_slice %11 {offsets = [0, 0], sizes = [15, 256], strides = [1, 1]} : vector<16x256xf32> to vector<15x256xf32>
    %14 = tpu.concatenate %12, %13 in 0 : vector<1x256xf32>, vector<15x256xf32> -> vector<16x256xf32>
    %15 = vector.extract_strided_slice %11 {offsets = [15, 0], sizes = [1, 256], strides = [1, 1]} : vector<16x256xf32> to vector<1x256xf32>
    %c0_10 = arith.constant 0 : index
    %c0_11 = arith.constant 0 : index
    %16 = vector.load %arg8[%c0_10, %c0_11] : memref<1x256xf32, #tpu.memory_space<vmem>>, vector<1x256xf32>
    tpu.vector_store %arg8[%c0_10, %c0_11], %15 {strides = array<i32>} : memref<1x256xf32, #tpu.memory_space<vmem>>, vector<1x256xf32>,
    %c16_i32 = arith.constant 16 : i32
    %17 = arith.muli %arg1, %c16_i32 : i32
    %18 = tpu.iota {dimensions = array<i32: 0>} : vector<16x1xi32>
    %19 = vector.broadcast %17 : i32 to vector<16x1xi32>
    %20 = arith.addi %19, %18 : vector<16x1xi32>
    %c1_i32 = arith.constant 1 : i32
    %21 = vector.broadcast %c1_i32 : i32 to vector<16x1xi32>
    %22 = arith.cmpi sge, %20, %21 : vector<16x1xi32>
    %c8_i32 = arith.constant 8 : i32
    %23 = vector.broadcast %c8_i32 : i32 to vector<16x1xi32>
    %24 = arith.cmpi sle, %20, %23 : vector<16x1xi32>
    %25 = arith.andi %22, %24 : vector<16x1xi1>
    %26 = arith.addf %10, %14 : vector<16x256xf32>
    %cst_12 = arith.constant 0.000000e+00 : f32
    %27 = vector.shape_cast %25 : vector<16x1xi1> to vector<16x1xi1>
    %28 = vector.broadcast %27 : vector<16x1xi1> to vector<16x256xi1>
    %29 = vector.broadcast %cst_12 : f32 to vector<16x256xf32>
    %30 = arith.select %28, %26, %29 : vector<16x256xi1>, vector<16x256xf32>
    %c0_13 = arith.constant 0 : index
    %c0_14 = arith.constant 0 : index
    %c0_15 = arith.constant 0 : index
    %31 = vector.load %arg3[%c0_13, %c0_14, %c0_15] : memref<1x16x256xf32, #tpu.memory_space<vmem>>, vector<1x16x256xf32>
    %32 = vector.shape_cast %31 : vector<1x16x256xf32> to vector<16x256xf32>
    %33 = arith.subf %32, %30 : vector<16x256xf32>
    %c0_16 = arith.constant 0 : index
    %c0_17 = arith.constant 0 : index
    %34 = vector.load %arg9[%c0_16, %c0_17] : memref<1x1xf32, #tpu.memory_space<vmem>>, vector<1x1xf32>
    %35 = arith.mulf %30, %30 : vector<16x256xf32>
    %36 = vector.shape_cast %35 : vector<16x256xf32> to vector<1x16x256xf32>
    %cst_18 = arith.constant dense<0.000000e+00> : vector<1xf32>
    %37 = vector.multi_reduction <add>, %36, %cst_18 [1, 2] : vector<1x16x256xf32> to vector<1xf32>
    %38 = vector.shape_cast %37 : vector<1xf32> to vector<1x1x1xf32>
    %39 = vector.extract %38[0, 0, 0] : f32 from vector<1x1x1xf32>
    %40 = vector.broadcast %39 : f32 to vector<1x1xf32>
    %41 = arith.addf %34, %40 : vector<1x1xf32>
    %c0_19 = arith.constant 0 : index
    %c0_20 = arith.constant 0 : index
    %42 = vector.load %arg9[%c0_19, %c0_20] : memref<1x1xf32, #tpu.memory_space<vmem>>, vector<1x1xf32>
    tpu.vector_store %arg9[%c0_19, %c0_20], %41 {strides = array<i32>} : memref<1x1xf32, #tpu.memory_space<vmem>>, vector<1x1xf32>,
    %c0_21 = arith.constant 0 : index
    %c0_22 = arith.constant 0 : index
    %43 = vector.load %arg10[%c0_21, %c0_22] : memref<1x1xf32, #tpu.memory_space<vmem>>, vector<1x1xf32>
    %44 = arith.mulf %33, %33 : vector<16x256xf32>
    %45 = vector.shape_cast %44 : vector<16x256xf32> to vector<1x16x256xf32>
    %cst_23 = arith.constant dense<0.000000e+00> : vector<1xf32>
    %46 = vector.multi_reduction <add>, %45, %cst_23 [1, 2] : vector<1x16x256xf32> to vector<1xf32>
    %47 = vector.shape_cast %46 : vector<1xf32> to vector<1x1x1xf32>
    %48 = vector.extract %47[0, 0, 0] : f32 from vector<1x1x1xf32>
    %49 = vector.broadcast %48 : f32 to vector<1x1xf32>
    %50 = arith.addf %43, %49 : vector<1x1xf32>
    %c0_24 = arith.constant 0 : index
    %c0_25 = arith.constant 0 : index
    %51 = vector.load %arg10[%c0_24, %c0_25] : memref<1x1xf32, #tpu.memory_space<vmem>>, vector<1x1xf32>
    tpu.vector_store %arg10[%c0_24, %c0_25], %50 {strides = array<i32>} : memref<1x1xf32, #tpu.memory_space<vmem>>, vector<1x1xf32>,
    %c0_i32_26 = arith.constant 0 : i32
    %52 = arith.cmpi eq, %arg1, %c0_i32_26 : i32
    %53 = arith.extui %52 : i1 to i32
    %c0_i32_27 = arith.constant 0 : i32
    %54 = arith.cmpi ne, %53, %c0_i32_27 : i32
    scf.if %54 {
      %cst_28 = arith.constant 1.000000e+00 : f32
      %55 = vector.broadcast %cst_28 : f32 to vector<1x128xf32>
      %c0_29 = arith.constant 0 : index
      %c0_30 = arith.constant 0 : index
      %56 = vector.load %arg9[%c0_29, %c0_30] : memref<1x1xf32, #tpu.memory_space<vmem>>, vector<1x1xf32>
      %57 = vector.broadcast %56 : vector<1x1xf32> to vector<1x128xf32>
      %58 = arith.mulf %57, %55 : vector<1x128xf32>
      %59 = vector.shape_cast %58 : vector<1x128xf32> to vector<1x1x128xf32>
      %c0_31 = arith.constant 0 : index
      %c0_32 = arith.constant 0 : index
      %c0_33 = arith.constant 0 : index
      %60 = vector.load %arg6[%c0_31, %c0_32, %c0_33] : memref<1x1x128xf32, #tpu.memory_space<vmem>>, vector<1x1x128xf32>
      tpu.vector_store %arg6[%c0_31, %c0_32, %c0_33], %59 {strides = array<i32>} : memref<1x1x128xf32, #tpu.memory_space<vmem>>, vector<1x1x128xf32>,
      %c0_34 = arith.constant 0 : index
      %c0_35 = arith.constant 0 : index
      %61 = vector.load %arg10[%c0_34, %c0_35] : memref<1x1xf32, #tpu.memory_space<vmem>>, vector<1x1xf32>
      %62 = vector.broadcast %61 : vector<1x1xf32> to vector<1x128xf32>
      %63 = arith.mulf %62, %55 : vector<1x128xf32>
      %64 = vector.shape_cast %63 : vector<1x128xf32> to vector<1x1x128xf32>
      %c0_36 = arith.constant 0 : index
      %c0_37 = arith.constant 0 : index
      %c0_38 = arith.constant 0 : index
      %65 = vector.load %arg7[%c0_36, %c0_37, %c0_38] : memref<1x1x128xf32, #tpu.memory_space<vmem>>, vector<1x1x128xf32>
      tpu.vector_store %arg7[%c0_36, %c0_37, %c0_38], %64 {strides = array<i32>} : memref<1x1x128xf32, #tpu.memory_space<vmem>>, vector<1x1x128xf32>,
    } else {
    }
    return
  }
  func.func @transform_0(%arg0: i32, %arg1: i32) -> (i32, i32, i32) {
    %c0_i32 = arith.constant 0 : i32
    %c0_i32_0 = arith.constant 0 : i32
    return %arg0, %arg1, %c0_i32 : i32, i32, i32
  }
  func.func @transform_1(%arg0: i32, %arg1: i32) -> (i32, i32, i32) {
    %c0_i32 = arith.constant 0 : i32
    %c0_i32_0 = arith.constant 0 : i32
    return %arg0, %arg1, %c0_i32 : i32, i32, i32
  }
  func.func @transform_2(%arg0: i32, %arg1: i32) -> (i32, i32) {
    %c0_i32 = arith.constant 0 : i32
    %c0_i32_0 = arith.constant 0 : i32
    %c0_i32_1 = arith.constant 0 : i32
    return %c0_i32, %c0_i32_0 : i32, i32
  }
  func.func @transform_3(%arg0: i32, %arg1: i32) -> (i32, i32) {
    %c0_i32 = arith.constant 0 : i32
    %c0_i32_0 = arith.constant 0 : i32
    %c0_i32_1 = arith.constant 0 : i32
    return %c0_i32, %c0_i32_0 : i32, i32
  }
  func.func @transform_4(%arg0: i32, %arg1: i32) -> (i32, i32, i32) {
    %c0_i32 = arith.constant 0 : i32
    %c0_i32_0 = arith.constant 0 : i32
    %c0_i32_1 = arith.constant 0 : i32
    return %arg0, %c0_i32, %c0_i32_0 : i32, i32, i32
  }
  func.func @transform_5(%arg0: i32, %arg1: i32) -> (i32, i32, i32) {
    %c0_i32 = arith.constant 0 : i32
    %c0_i32_0 = arith.constant 0 : i32
    %c0_i32_1 = arith.constant 0 : i32
    return %arg0, %c0_i32, %c0_i32_0 : i32, i32, i32
  }
}

</mosaic_0001>

<llo_original>
// kernel: _lambda_.1
$region0: #{_lambda_.1}
  #allocation0 [shape = 'u32[]', space=smem, size = 0x4, offset = 0x4, fixed_abs, tag = 'smem constant byte address 0x4 - core index']
  #allocation1 [shape = 'u32[144,128]{1,0:T(1,128)}', space=vmem, size = 0x12000, scoped, tag = 'internal scratch']
  #allocation2 [shape = 'f32[1,256]{1,0:T(1,128)}', space=vmem, size = 0x400, scoped, tag = 'scratch operand']
  #allocation3 [shape = 'f32[1,1]{1,0:T(1,128)}', space=vmem, size = 0x200, scoped, tag = 'scratch operand']
  #allocation4 [shape = 'f32[1,1]{1,0:T(1,128)}', space=vmem, size = 0x200, scoped, tag = 'scratch operand']
  %s0 = inlined_call_operand.vmem [shape: bf16[2,16,512], index: 0, kind: input, shape index: {}]
  %s1 = inlined_call_operand.vmem [shape: f32[2,16,256], index: 1, kind: input, shape index: {}]
  %s2 = inlined_call_operand.vmem [shape: bf16[512,768], index: 2, kind: input, shape index: {}]
  %s3 = inlined_call_operand.vmem [shape: bf16[768,512], index: 3, kind: input, shape index: {}]
  %s4 = inlined_call_operand.vmem [shape: f32[2,1,128], index: 4, kind: output, shape index: {0}]
  %s5 = inlined_call_operand.vmem [shape: f32[2,1,128], index: 5, kind: output, shape index: {1}]
  %6 = xla_tuple %s4, %s5
  %s7 = sld [smem:[#allocation0]]
  $region65: #{_lambda_.1} parent=0
    _
  %s9 = ssub.s32 1, %s7
  %s10 = scalar_select 0, %s9, %s7
  loop: start=0, step=1, limit=4
  $region2: #{_lambda_.1} parent=0 // loop_pre_header
    _
  $region3: #{_lambda_.1} parent=0 // loop_header
    %s12 = sphi 0, %s16
    %p13 = scmp.ge.s32.totalorder %s12, 4
    %s19 = sphi 0, %s31
    %s20 = sphi 0, %s27
    %s21 = sphi 0, %s19
    %s22 = sphi 0, %s20
    %s23 = sphi 0, %s21
    %s24 = sphi 0, %s22
    %s36 = sphi 0, %s38
    %s39 = sphi 0, %s36
    %s40 = sphi 0, %s39
    %s56 = sphi 0, %s40
    %s64 = sphi 0, %s66
    %s67 = sphi 0, %s64
    %s68 = sphi 0, %s67
    %s84 = sphi 0, %s68
    %s88 = sphi 0, %s88
    %s90 = sphi 0, %s88
    %s91 = sphi 0, %s90
    %s105 = sphi 0, %s91
    %s109 = sphi 0, %s109
    %s111 = sphi 0, %s109
    %s112 = sphi 0, %s111
    %s126 = sphi 0, %s112
    %s132 = sphi 0, %s134
    %s135 = sphi 0, %s132
    %s136 = sphi 0, %s135
    %s152 = sphi 0, %s136
    %s158 = sphi 0, %s160
    %s161 = sphi 0, %s158
    %s162 = sphi 0, %s161
    %s178 = sphi 0, %s162
  $region4: #{_lambda_.1} parent=0 // loop_header_branch
    %15 = sbr.rel (%p13) target = $region8
  $region5: #{_lambda_.1} parent=0 // loop_body
    %s17 = ssub.s32 %s12, 1
    %s18 = ssub.s32 %s12, 2
    %s25 = sadd.s32 1, %s20
    %p26 = scmp.ge.s32.totalorder %s25, 1
    %s27 = scalar_select %p26, 0, %s25
    %s28 = sadd.s32 1, %s19
    %s29 = scalar_select %p26, %s28, %s19
    %p30 = scmp.ge.s32.totalorder %s29, 2
    %s31 = scalar_select %p30, 0, %s29
    %s32 = ssub.s32 %s19, %s31
    %s33 = ssub.s32 %s20, %s27
    %s34 = sor.u32 %s32, %s33
    %p35 = scmp.eq.s32.totalorder %s34, 0
    %s37 = sadd.s32 %s36, 1
    %s38 = scalar_select %p35, %s36, %s37
    %p41 = pneg %p35
    %p42 = scmp.eq.s32.totalorder %s12, 1
    %p43 = por %p41, %p42
    %p44 = scmp.ne.s32.totalorder %s36, %s39
    %p45 = scmp.eq.s32.totalorder %s12, 0
    %p46 = por %p44, %p45
    %p47 = scmp.ne.s32.totalorder %s36, %s39
    %p48 = scmp.eq.s32.totalorder %s17, 1
    %p49 = por %p47, %p48
    %p50 = scmp.ne.s32.totalorder %s39, %s40
    %p51 = scmp.eq.s32.totalorder %s17, 0
    %p52 = por %p50, %p51
    %p53 = scmp.ne.s32.totalorder %s39, %s40
    %p54 = scmp.eq.s32.totalorder %s18, 1
    %p55 = por %p53, %p54
    %p57 = scmp.ne.s32.totalorder %s40, %s56
    %p58 = scmp.eq.s32.totalorder %s18, 0
    %p59 = por %p57, %p58
    %s60 = ssub.s32 %s19, %s31
    %s61 = ssub.s32 %s20, %s27
    %s62 = sor.u32 %s60, %s61
    %p63 = scmp.eq.s32.totalorder %s62, 0
    %s65 = sadd.s32 %s64, 1
    %s66 = scalar_select %p63, %s64, %s65
    %p69 = pneg %p63
    %p70 = scmp.eq.s32.totalorder %s12, 1
    %p71 = por %p69, %p70
    %p72 = scmp.ne.s32.totalorder %s64, %s67
    %p73 = scmp.eq.s32.totalorder %s12, 0
    %p74 = por %p72, %p73
    %p75 = scmp.ne.s32.totalorder %s64, %s67
    %p76 = scmp.eq.s32.totalorder %s17, 1
    %p77 = por %p75, %p76
    %p78 = scmp.ne.s32.totalorder %s67, %s68
    %p79 = scmp.eq.s32.totalorder %s17, 0
    %p80 = por %p78, %p79
    %p81 = scmp.ne.s32.totalorder %s67, %s68
    %p82 = scmp.eq.s32.totalorder %s18, 1
    %p83 = por %p81, %p82
    %p85 = scmp.ne.s32.totalorder %s68, %s84
    %p86 = scmp.eq.s32.totalorder %s18, 0
    %p87 = por %p85, %p86
    %s89 = sadd.s32 %s88, 1
    %p92 = scmp.eq.s32.totalorder %s12, 1
    %p93 = scmp.ne.s32.totalorder %s88, %s90
    %p94 = scmp.eq.s32.totalorder %s12, 0
    %p95 = por %p93, %p94
    %p96 = scmp.ne.s32.totalorder %s88, %s90
    %p97 = scmp.eq.s32.totalorder %s17, 1
    %p98 = por %p96, %p97
    %p99 = scmp.ne.s32.totalorder %s90, %s91
    %p100 = scmp.eq.s32.totalorder %s17, 0
    %p101 = por %p99, %p100
    %p102 = scmp.ne.s32.totalorder %s90, %s91
    %p103 = scmp.eq.s32.totalorder %s18, 1
    %p104 = por %p102, %p103
    %p106 = scmp.ne.s32.totalorder %s91, %s105
    %p107 = scmp.eq.s32.totalorder %s18, 0
    %p108 = por %p106, %p107
    %s110 = sadd.s32 %s109, 1
    %p113 = scmp.eq.s32.totalorder %s12, 1
    %p114 = scmp.ne.s32.totalorder %s109, %s111
    %p115 = scmp.eq.s32.totalorder %s12, 0
    %p116 = por %p114, %p115
    %p117 = scmp.ne.s32.totalorder %s109, %s111
    %p118 = scmp.eq.s32.totalorder %s17, 1
    %p119 = por %p117, %p118
    %p120 = scmp.ne.s32.totalorder %s111, %s112
    %p121 = scmp.eq.s32.totalorder %s17, 0
    %p122 = por %p120, %p121
    %p123 = scmp.ne.s32.totalorder %s111, %s112
    %p124 = scmp.eq.s32.totalorder %s18, 1
    %p125 = por %p123, %p124
    %p127 = scmp.ne.s32.totalorder %s112, %s126
    %p128 = scmp.eq.s32.totalorder %s18, 0
    %p129 = por %p127, %p128
    %s130 = ssub.s32 %s19, %s31
    %p131 = scmp.eq.s32.totalorder %s130, 0
    %s133 = sadd.s32 %s132, 1
    %s134 = scalar_select %p131, %s132, %s133
    %p137 = pneg %p131
    %p138 = scmp.eq.s32.totalorder %s12, 1
    %p139 = por %p137, %p138
    %p140 = scmp.ne.s32.totalorder %s132, %s135
    %p141 = scmp.eq.s32.totalorder %s12, 0
    %p142 = por %p140, %p141
    %p143 = scmp.ne.s32.totalorder %s132, %s135
    %p144 = scmp.eq.s32.totalorder %s17, 1
    %p145 = por %p143, %p144
    %p146 = scmp.ne.s32.totalorder %s135, %s136
    %p147 = scmp.eq.s32.totalorder %s17, 0
    %p148 = por %p146, %p147
    %p149 = scmp.ne.s32.totalorder %s135, %s136
    %p150 = scmp.eq.s32.totalorder %s18, 1
    %p151 = por %p149, %p150
    %p153 = scmp.ne.s32.totalorder %s136, %s152
    %p154 = scmp.eq.s32.totalorder %s18, 0
    %p155 = por %p153, %p154
    %s156 = ssub.s32 %s19, %s31
    %p157 = scmp.eq.s32.totalorder %s156, 0
    %s159 = sadd.s32 %s158, 1
    %s160 = scalar_select %p157, %s158, %s159
    %p163 = pneg %p157
    %p164 = scmp.eq.s32.totalorder %s12, 1
    %p165 = por %p163, %p164
    %p166 = scmp.ne.s32.totalorder %s158, %s161
    %p167 = scmp.eq.s32.totalorder %s12, 0
    %p168 = por %p166, %p167
    %p169 = scmp.ne.s32.totalorder %s158, %s161
    %p170 = scmp.eq.s32.totalorder %s17, 1
    %p171 = por %p169, %p170
    %p172 = scmp.ne.s32.totalorder %s161, %s162
    %p173 = scmp.eq.s32.totalorder %s17, 0
    %p174 = por %p172, %p173
    %p175 = scmp.ne.s32.totalorder %s161, %s162
    %p176 = scmp.eq.s32.totalorder %s18, 1
    %p177 = por %p175, %p176
    %p179 = scmp.ne.s32.totalorder %s162, %s178
    %p180 = scmp.eq.s32.totalorder %s18, 0
    %p181 = por %p179, %p180
    %p182 = scmp.le.s32.totalorder 1, %s12
    %p183 = scmp.lt.s32.totalorder %s12, 3
    %p184 = pnand %p182, %p183
    %p185 = pneg %p184
    // Predicated region
    $region9: #{_lambda_.1} parent=5 // pred_check
      _
    $region10: #{_lambda_.1} parent=5 // pred_check_branch
      %187 = sbr.rel (%p184) target = $region12
    $region11: #{_lambda_.1} parent=5 // pred_region
      %s188 = ssub.s32 %s12, 1
      // Predicated region
      $region13: #{_lambda_.1} parent=11 // pred_check
        %p189 = pneg %p101
      $region14: #{_lambda_.1} parent=11 // pred_check_branch
        %191 = sbr.rel (%p189) target = $region16
      $region15: #{_lambda_.1} parent=11 // pred_region
        _
      $region16: #{_lambda_.1} parent=11 // pred_fallthru
        _
      // Predicated region
      $region17: #{_lambda_.1} parent=11 // pred_check
        %p192 = pneg %p122
      $region18: #{_lambda_.1} parent=11 // pred_check_branch
        %194 = sbr.rel (%p192) target = $region20
      $region19: #{_lambda_.1} parent=11 // pred_region
        _
      $region20: #{_lambda_.1} parent=11 // pred_fallthru
        _
    $region12: #{_lambda_.1} parent=5 // pred_fallthru
      _
    %p195 = scmp.lt.s32.totalorder %s12, 2
    // Predicated region
    $region21: #{_lambda_.1} parent=5 // pred_check
      %p196 = pneg %p195
    $region22: #{_lambda_.1} parent=5 // pred_check_branch
      %198 = sbr.rel (%p196) target = $region24
    $region23: #{_lambda_.1} parent=5 // pred_region
      // Predicated region
      $region25: #{_lambda_.1} parent=23 // pred_check
        %p199 = pneg %p46
      $region26: #{_lambda_.1} parent=23 // pred_check_branch
        %201 = sbr.rel (%p199) target = $region28
      $region27: #{_lambda_.1} parent=23 // pred_region
        %s202 = smul.u32 2, %s20
        %p203 = scmp.lt.s32.totalorder %s19, 1
        %s204 = scalar_select %p203, %s19, 1
        %p205 = scmp.lt.s32.totalorder %s202, 1
        %s206 = scalar_select %p205, %s202, 1
        %s207 = smul.addr %s206, 4
        %s208 = smul.addr %s204, 8
        %s209 = sadd.s32 %s207, %s208
        %s210 = smul.addr %s209, 4
        %s211 = scalar_lea.vmem %s0, %s210
        %s212 = smul.u32 2, %s20
      $region28: #{_lambda_.1} parent=23 // pred_fallthru
        _
      // Predicated region
      $region29: #{_lambda_.1} parent=23 // pred_check
        %p213 = pneg %p74
      $region30: #{_lambda_.1} parent=23 // pred_check_branch
        %215 = sbr.rel (%p213) target = $region32
      $region31: #{_lambda_.1} parent=23 // pred_region
        %s216 = smul.u32 2, %s20
        %p217 = scmp.lt.s32.totalorder %s19, 1
        %s218 = scalar_select %p217, %s19, 1
        %p219 = scmp.lt.s32.totalorder %s216, 1
        %s220 = scalar_select %p219, %s216, 1
        %s221 = smul.addr %s220, 2
        %s222 = smul.addr %s218, 4
        %s223 = sadd.s32 %s221, %s222
        %s224 = smul.addr %s223, 8
        %s225 = scalar_lea.vmem %s1, %s224
        %s226 = smul.u32 2, %s20
      $region32: #{_lambda_.1} parent=23 // pred_fallthru
        _
    $region24: #{_lambda_.1} parent=5 // pred_fallthru
      _
    %p227 = scmp.le.s32.totalorder 1, %s12
    %p228 = scmp.lt.s32.totalorder %s12, 3
    %p229 = pnand %p227, %p228
    %p230 = pneg %p229
    // Predicated region
    $region33: #{_lambda_.1} parent=5 // pred_check
      _
    $region34: #{_lambda_.1} parent=5 // pred_check_branch
      %232 = sbr.rel (%p229) target = $region36
    $region35: #{_lambda_.1} parent=5 // pred_region
      %s233 = ssub.s32 %s12, 1
      %s234 = smul.u32 2, %s22
      %p235 = scmp.lt.s32.totalorder %s21, 1
      %s236 = scalar_select %p235, %s21, 1
      %p237 = scmp.lt.s32.totalorder %s234, 1
      %s238 = scalar_select %p237, %s234, 1
      %s239 = smul.addr %s238, 4
      %s240 = smul.addr %s236, 8
      %s241 = sadd.s32 %s239, %s240
      %s242 = smul.addr %s241, 4
      %s243 = scalar_lea.vmem %s0, %s242
      %p244 = pneg %p52
      %p245 = pneg %p49
      %s246 = smul.u32 2, %s22
      %p247 = scmp.lt.s32.totalorder %s21, 1
      %s248 = scalar_select %p247, %s21, 1
      %p249 = scmp.lt.s32.totalorder %s246, 1
      %s250 = scalar_select %p249, %s246, 1
      %s251 = smul.addr %s250, 2
      %s252 = smul.addr %s248, 4
      %s253 = sadd.s32 %s251, %s252
      %s254 = smul.addr %s253, 8
      %s255 = scalar_lea.vmem %s1, %s254
      %p256 = pneg %p80
      %p257 = pneg %p77
      %p258 = pneg %p101
      %p259 = pneg %p98
      %p260 = pneg %p122
      %p261 = pneg %p119
      %p262 = pneg %p148
      %p263 = pneg %p145
      %p264 = scmp.lt.s32.totalorder %s21, 1
      %s265 = scalar_select %p264, %s21, 1
      %s266 = scalar_lea.vmem %s4, %s265
      %p267 = pneg %p174
      %p268 = pneg %p171
      %p269 = scmp.lt.s32.totalorder %s21, 1
      %s270 = scalar_select %p269, %s21, 1
      %s271 = scalar_lea.vmem %s5, %s270
      %s272 = smul.u32 2, %s22
      %p273 = scmp.lt.s32.totalorder %s21, 1
      %s274 = scalar_select %p273, %s21, 1
      %p275 = scmp.lt.s32.totalorder %s272, 1
      %s276 = scalar_select %p275, %s272, 1
      %s277 = smul.addr %s276, 4
      %s278 = smul.addr %s274, 8
      %s279 = sadd.s32 %s277, %s278
      %s280 = smul.addr %s279, 4
      %s281 = scalar_lea.vmem %s0, %s280
      %s282 = smul.u32 2, %s22
      %s283 = smul.u32 2, %s22
      %p284 = scmp.lt.s32.totalorder %s21, 1
      %s285 = scalar_select %p284, %s21, 1
      %p286 = scmp.lt.s32.totalorder %s283, 1
      %s287 = scalar_select %p286, %s283, 1
      %s288 = smul.addr %s287, 2
      %s289 = smul.addr %s285, 4
      %s290 = sadd.s32 %s288, %s289
      %s291 = smul.addr %s290, 8
      %s292 = scalar_lea.vmem %s1, %s291
      %s293 = smul.u32 2, %s22
      %p294 = scmp.lt.s32.totalorder %s21, 1
      %s295 = scalar_select %p294, %s21, 1
      %s296 = scalar_lea.vmem %s4, %s295
      %p297 = scmp.lt.s32.totalorder %s21, 1
      %s298 = scalar_select %p297, %s21, 1
      %s299 = scalar_lea.vmem %s5, %s298
      %p300 = scmp.eq.s32.totalorder %s22, 0
      // Predicated region
      $region37: #{_lambda_.1} parent=35 // pred_check
        %p301 = pneg %p300
      $region38: #{_lambda_.1} parent=35 // pred_check_branch
        %303 = sbr.rel (%p301) target = $region40
      $region39: #{_lambda_.1} parent=35 // pred_region
        %v304 = vlaneseq
        %vm305 = vcmp.ge.s32.totalorder %v304, 0
        %vm306 = vcmp.lt.s32.totalorder %v304, 256
        %vm307 = vmand %vm305, %vm306
        %308 = vst.msk [vmem:[#allocation2] sm:$0x3] %vm307, 0.0
        %vm309 = vcmask 0
        %310 = vst.msk [vmem:[#allocation3] sm:$0x1] %vm309, 0.0
        %311 = vst.msk [vmem:[#allocation4] sm:$0x1] %vm309, 0.0
      $region40: #{_lambda_.1} parent=35 // pred_fallthru
        _
      %v312 = vld [vmem:[%s281] sm:$0xff]
      %v313 = vld [vmem:[%s281 + $0x8] sm:$0xff]
      %v314 = vld [vmem:[%s281 + $0x10] sm:$0xff]
      %v315 = vld [vmem:[%s281 + $0x18] sm:$0xff]
      %v316 = vld [vmem:[%s2] sm:$0xff]
      %v317 = vld [vmem:[%s2 + $0x8] sm:$0xff]
      %v318 = vld [vmem:[%s2 + $0x10] sm:$0xff]
      %v319 = vld [vmem:[%s2 + $0x18] sm:$0xff]
      %v320 = vld [vmem:[%s2 + $0x20] sm:$0xff]
      %v321 = vld [vmem:[%s2 + $0x28] sm:$0xff]
      %v322 = vld [vmem:[%s2 + $0x30] sm:$0xff]
      %v323 = vld [vmem:[%s2 + $0x38] sm:$0xff]
      %v324 = vld [vmem:[%s2 + $0x40] sm:$0xff]
      %v325 = vld [vmem:[%s2 + $0x48] sm:$0xff]
      %v326 = vld [vmem:[%s2 + $0x50] sm:$0xff]
      %v327 = vld [vmem:[%s2 + $0x58] sm:$0xff]
      %v328 = vld [vmem:[%s2 + $0x60] sm:$0xff]
      %v329 = vld [vmem:[%s2 + $0x68] sm:$0xff]
      %v330 = vld [vmem:[%s2 + $0x70] sm:$0xff]
      %v331 = vld [vmem:[%s2 + $0x78] sm:$0xff]
      %v332 = vld [vmem:[%s2 + $0x80] sm:$0xff]
      %v333 = vld [vmem:[%s2 + $0x88] sm:$0xff]
      %v334 = vld [vmem:[%s2 + $0x90] sm:$0xff]
      %v335 = vld [vmem:[%s2 + $0x98] sm:$0xff]
      %v336 = vld [vmem:[%s2 + $0xa0] sm:$0xff]
      %v337 = vld [vmem:[%s2 + $0xa8] sm:$0xff]
      %v338 = vld [vmem:[%s2 + $0xb0] sm:$0xff]
      %v339 = vld [vmem:[%s2 + $0xb8] sm:$0xff]
      %v340 = vld [vmem:[%s2 + $0xc0] sm:$0xff]
      %v341 = vld [vmem:[%s2 + $0xc8] sm:$0xff]
      %v342 = vld [vmem:[%s2 + $0xd0] sm:$0xff]
      %v343 = vld [vmem:[%s2 + $0xd8] sm:$0xff]
      %v344 = vld [vmem:[%s2 + $0xe0] sm:$0xff]
      %v345 = vld [vmem:[%s2 + $0xe8] sm:$0xff]
      %v346 = vld [vmem:[%s2 + $0xf0] sm:$0xff]
      %v347 = vld [vmem:[%s2 + $0xf8] sm:$0xff]
      %v348 = vld [vmem:[%s2 + $0x100] sm:$0xff]
      %v349 = vld [vmem:[%s2 + $0x108] sm:$0xff]
      %v350 = vld [vmem:[%s2 + $0x110] sm:$0xff]
      %v351 = vld [vmem:[%s2 + $0x118] sm:$0xff]
      %v352 = vld [vmem:[%s2 + $0x120] sm:$0xff]
      %v353 = vld [vmem:[%s2 + $0x128] sm:$0xff]
      %v354 = vld [vmem:[%s2 + $0x130] sm:$0xff]
      %v355 = vld [vmem:[%s2 + $0x138] sm:$0xff]
      %v356 = vld [vmem:[%s2 + $0x140] sm:$0xff]
      %v357 = vld [vmem:[%s2 + $0x148] sm:$0xff]
      %v358 = vld [vmem:[%s2 + $0x150] sm:$0xff]
      %v359 = vld [vmem:[%s2 + $0x158] sm:$0xff]
      %v360 = vld [vmem:[%s2 + $0x160] sm:$0xff]
      %v361 = vld [vmem:[%s2 + $0x168] sm:$0xff]
      %v362 = vld [vmem:[%s2 + $0x170] sm:$0xff]
      %v363 = vld [vmem:[%s2 + $0x178] sm:$0xff]
      %v364 = vld [vmem:[%s2 + $0x180] sm:$0xff]
      %v365 = vld [vmem:[%s2 + $0x188] sm:$0xff]
      %v366 = vld [vmem:[%s2 + $0x190] sm:$0xff]
      %v367 = vld [vmem:[%s2 + $0x198] sm:$0xff]
      %v368 = vld [vmem:[%s2 + $0x1a0] sm:$0xff]
      %v369 = vld [vmem:[%s2 + $0x1a8] sm:$0xff]
      %v370 = vld [vmem:[%s2 + $0x1b0] sm:$0xff]
      %v371 = vld [vmem:[%s2 + $0x1b8] sm:$0xff]
      %v372 = vld [vmem:[%s2 + $0x1c0] sm:$0xff]
      %v373 = vld [vmem:[%s2 + $0x1c8] sm:$0xff]
      %v374 = vld [vmem:[%s2 + $0x1d0] sm:$0xff]
      %v375 = vld [vmem:[%s2 + $0x1d8] sm:$0xff]
      %v376 = vld [vmem:[%s2 + $0x1e0] sm:$0xff]
      %v377 = vld [vmem:[%s2 + $0x1e8] sm:$0xff]
      %v378 = vld [vmem:[%s2 + $0x1f0] sm:$0xff]
      %v379 = vld [vmem:[%s2 + $0x1f8] sm:$0xff]
      %v380 = vld [vmem:[%s2 + $0x200] sm:$0xff]
      %v381 = vld [vmem:[%s2 + $0x208] sm:$0xff]
      %v382 = vld [vmem:[%s2 + $0x210] sm:$0xff]
      %v383 = vld [vmem:[%s2 + $0x218] sm:$0xff]
      %v384 = vld [vmem:[%s2 + $0x220] sm:$0xff]
      %v385 = vld [vmem:[%s2 + $0x228] sm:$0xff]
      %v386 = vld [vmem:[%s2 + $0x230] sm:$0xff]
      %v387 = vld [vmem:[%s2 + $0x238] sm:$0xff]
      %v388 = vld [vmem:[%s2 + $0x240] sm:$0xff]
      %v389 = vld [vmem:[%s2 + $0x248] sm:$0xff]
      %v390 = vld [vmem:[%s2 + $0x250] sm:$0xff]
      %v391 = vld [vmem:[%s2 + $0x258] sm:$0xff]
      %v392 = vld [vmem:[%s2 + $0x260] sm:$0xff]
      %v393 = vld [vmem:[%s2 + $0x268] sm:$0xff]
      %v394 = vld [vmem:[%s2 + $0x270] sm:$0xff]
      %v395 = vld [vmem:[%s2 + $0x278] sm:$0xff]
      %v396 = vld [vmem:[%s2 + $0x280] sm:$0xff]
      %v397 = vld [vmem:[%s2 + $0x288] sm:$0xff]
      %v398 = vld [vmem:[%s2 + $0x290] sm:$0xff]
      %v399 = vld [vmem:[%s2 + $0x298] sm:$0xff]
      %v400 = vld [vmem:[%s2 + $0x2a0] sm:$0xff]
      %v401 = vld [vmem:[%s2 + $0x2a8] sm:$0xff]
      %v402 = vld [vmem:[%s2 + $0x2b0] sm:$0xff]
      %v403 = vld [vmem:[%s2 + $0x2b8] sm:$0xff]
      %v404 = vld [vmem:[%s2 + $0x2c0] sm:$0xff]
      %v405 = vld [vmem:[%s2 + $0x2c8] sm:$0xff]
      %v406 = vld [vmem:[%s2 + $0x2d0] sm:$0xff]
      %v407 = vld [vmem:[%s2 + $0x2d8] sm:$0xff]
      %v408 = vld [vmem:[%s2 + $0x2e0] sm:$0xff]
      %v409 = vld [vmem:[%s2 + $0x2e8] sm:$0xff]
      %v410 = vld [vmem:[%s2 + $0x2f0] sm:$0xff]
      %v411 = vld [vmem:[%s2 + $0x2f8] sm:$0xff]
      %v412 = vld [vmem:[%s2 + $0x300] sm:$0xff]
      %v413 = vld [vmem:[%s2 + $0x308] sm:$0xff]
      %v414 = vld [vmem:[%s2 + $0x310] sm:$0xff]
      %v415 = vld [vmem:[%s2 + $0x318] sm:$0xff]
      %v416 = vld [vmem:[%s2 + $0x320] sm:$0xff]
      %v417 = vld [vmem:[%s2 + $0x328] sm:$0xff]
      %v418 = vld [vmem:[%s2 + $0x330] sm:$0xff]
      %v419 = vld [vmem:[%s2 + $0x338] sm:$0xff]
      %v420 = vld [vmem:[%s2 + $0x340] sm:$0xff]
      %v421 = vld [vmem:[%s2 + $0x348] sm:$0xff]
      %v422 = vld [vmem:[%s2 + $0x350] sm:$0xff]
      %v423 = vld [vmem:[%s2 + $0x358] sm:$0xff]
      %v424 = vld [vmem:[%s2 + $0x360] sm:$0xff]
      %v425 = vld [vmem:[%s2 + $0x368] sm:$0xff]
      %v426 = vld [vmem:[%s2 + $0x370] sm:$0xff]
      %v427 = vld [vmem:[%s2 + $0x378] sm:$0xff]
      %v428 = vld [vmem:[%s2 + $0x380] sm:$0xff]
      %v429 = vld [vmem:[%s2 + $0x388] sm:$0xff]
      %v430 = vld [vmem:[%s2 + $0x390] sm:$0xff]
      %v431 = vld [vmem:[%s2 + $0x398] sm:$0xff]
      %v432 = vld [vmem:[%s2 + $0x3a0] sm:$0xff]
      %v433 = vld [vmem:[%s2 + $0x3a8] sm:$0xff]
      %v434 = vld [vmem:[%s2 + $0x3b0] sm:$0xff]
      %v435 = vld [vmem:[%s2 + $0x3b8] sm:$0xff]
      %v436 = vld [vmem:[%s2 + $0x3c0] sm:$0xff]
      %v437 = vld [vmem:[%s2 + $0x3c8] sm:$0xff]
      %v438 = vld [vmem:[%s2 + $0x3d0] sm:$0xff]
      %v439 = vld [vmem:[%s2 + $0x3d8] sm:$0xff]
      %v440 = vld [vmem:[%s2 + $0x3e0] sm:$0xff]
      %v441 = vld [vmem:[%s2 + $0x3e8] sm:$0xff]
      %v442 = vld [vmem:[%s2 + $0x3f0] sm:$0xff]
      %v443 = vld [vmem:[%s2 + $0x3f8] sm:$0xff]
      %v444 = vld [vmem:[%s2 + $0x400] sm:$0xff]
      %v445 = vld [vmem:[%s2 + $0x408] sm:$0xff]
      %v446 = vld [vmem:[%s2 + $0x410] sm:$0xff]
      %v447 = vld [vmem:[%s2 + $0x418] sm:$0xff]
      %v448 = vld [vmem:[%s2 + $0x420] sm:$0xff]
      %v449 = vld [vmem:[%s2 + $0x428] sm:$0xff]
      %v450 = vld [vmem:[%s2 + $0x430] sm:$0xff]
      %v451 = vld [vmem:[%s2 + $0x438] sm:$0xff]
      %v452 = vld [vmem:[%s2 + $0x440] sm:$0xff]
      %v453 = vld [vmem:[%s2 + $0x448] sm:$0xff]
      %v454 = vld [vmem:[%s2 + $0x450] sm:$0xff]
      %v455 = vld [vmem:[%s2 + $0x458] sm:$0xff]
      %v456 = vld [vmem:[%s2 + $0x460] sm:$0xff]
      %v457 = vld [vmem:[%s2 + $0x468] sm:$0xff]
      %v458 = vld [vmem:[%s2 + $0x470] sm:$0xff]
      %v459 = vld [vmem:[%s2 + $0x478] sm:$0xff]
      %v460 = vld [vmem:[%s2 + $0x480] sm:$0xff]
      %v461 = vld [vmem:[%s2 + $0x488] sm:$0xff]
      %v462 = vld [vmem:[%s2 + $0x490] sm:$0xff]
      %v463 = vld [vmem:[%s2 + $0x498] sm:$0xff]
      %v464 = vld [vmem:[%s2 + $0x4a0] sm:$0xff]
      %v465 = vld [vmem:[%s2 + $0x4a8] sm:$0xff]
      %v466 = vld [vmem:[%s2 + $0x4b0] sm:$0xff]
      %v467 = vld [vmem:[%s2 + $0x4b8] sm:$0xff]
      %v468 = vld [vmem:[%s2 + $0x4c0] sm:$0xff]
      %v469 = vld [vmem:[%s2 + $0x4c8] sm:$0xff]
      %v470 = vld [vmem:[%s2 + $0x4d0] sm:$0xff]
      %v471 = vld [vmem:[%s2 + $0x4d8] sm:$0xff]
      %v472 = vld [vmem:[%s2 + $0x4e0] sm:$0xff]
      %v473 = vld [vmem:[%s2 + $0x4e8] sm:$0xff]
      %v474 = vld [vmem:[%s2 + $0x4f0] sm:$0xff]
      %v475 = vld [vmem:[%s2 + $0x4f8] sm:$0xff]
      %v476 = vld [vmem:[%s2 + $0x500] sm:$0xff]
      %v477 = vld [vmem:[%s2 + $0x508] sm:$0xff]
      %v478 = vld [vmem:[%s2 + $0x510] sm:$0xff]
      %v479 = vld [vmem:[%s2 + $0x518] sm:$0xff]
      %v480 = vld [vmem:[%s2 + $0x520] sm:$0xff]
      %v481 = vld [vmem:[%s2 + $0x528] sm:$0xff]
      %v482 = vld [vmem:[%s2 + $0x530] sm:$0xff]
      %v483 = vld [vmem:[%s2 + $0x538] sm:$0xff]
      %v484 = vld [vmem:[%s2 + $0x540] sm:$0xff]
      %v485 = vld [vmem:[%s2 + $0x548] sm:$0xff]
      %v486 = vld [vmem:[%s2 + $0x550] sm:$0xff]
      %v487 = vld [vmem:[%s2 + $0x558] sm:$0xff]
      %v488 = vld [vmem:[%s2 + $0x560] sm:$0xff]
      %v489 = vld [vmem:[%s2 + $0x568] sm:$0xff]
      %v490 = vld [vmem:[%s2 + $0x570] sm:$0xff]
      %v491 = vld [vmem:[%s2 + $0x578] sm:$0xff]
      %v492 = vld [vmem:[%s2 + $0x580] sm:$0xff]
      %v493 = vld [vmem:[%s2 + $0x588] sm:$0xff]
      %v494 = vld [vmem:[%s2 + $0x590] sm:$0xff]
      %v495 = vld [vmem:[%s2 + $0x598] sm:$0xff]
      %v496 = vld [vmem:[%s2 + $0x5a0] sm:$0xff]
      %v497 = vld [vmem:[%s2 + $0x5a8] sm:$0xff]
      %v498 = vld [vmem:[%s2 + $0x5b0] sm:$0xff]
      %v499 = vld [vmem:[%s2 + $0x5b8] sm:$0xff]
      %v500 = vld [vmem:[%s2 + $0x5c0] sm:$0xff]
      %v501 = vld [vmem:[%s2 + $0x5c8] sm:$0xff]
      %v502 = vld [vmem:[%s2 + $0x5d0] sm:$0xff]
      %v503 = vld [vmem:[%s2 + $0x5d8] sm:$0xff]
      %v504 = vld [vmem:[%s2 + $0x5e0] sm:$0xff]
      %v505 = vld [vmem:[%s2 + $0x5e8] sm:$0xff]
      %v506 = vld [vmem:[%s2 + $0x5f0] sm:$0xff]
      %v507 = vld [vmem:[%s2 + $0x5f8] sm:$0xff]
      %v512 = vunpack.c.l.b16 %v312
      %v513 = vunpack.c.h.b16 %v312
      %v514 = vunpack.c.l.b16 %v313
      %v515 = vunpack.c.h.b16 %v313
      %v516 = vunpack.c.l.b16 %v314
      %v517 = vunpack.c.h.b16 %v314
      %v518 = vunpack.c.l.b16 %v315
      %v519 = vunpack.c.h.b16 %v315
      %v520 = vpack.c.b16 %v516, %v512
      %v521 = vpack.c.b16 %v517, %v513
      %v522 = vpack.c.b16 %v518, %v514
      %v523 = vpack.c.b16 %v519, %v515
      %v720 = vunpack.c.l.b16 %v316
      %v721 = vunpack.c.h.b16 %v316
      %v722 = vunpack.c.l.b16 %v317
      %v723 = vunpack.c.h.b16 %v317
      %v724 = vunpack.c.l.b16 %v318
      %v725 = vunpack.c.h.b16 %v318
      %v726 = vunpack.c.l.b16 %v319
      %v727 = vunpack.c.h.b16 %v319
      %v728 = vunpack.c.l.b16 %v320
      %v729 = vunpack.c.h.b16 %v320
      %v730 = vunpack.c.l.b16 %v321
      %v731 = vunpack.c.h.b16 %v321
      %v732 = vunpack.c.l.b16 %v322
      %v733 = vunpack.c.h.b16 %v322
      %v734 = vunpack.c.l.b16 %v323
      %v735 = vunpack.c.h.b16 %v323
      %v736 = vunpack.c.l.b16 %v324
      %v737 = vunpack.c.h.b16 %v324
      %v738 = vunpack.c.l.b16 %v325
      %v739 = vunpack.c.h.b16 %v325
      %v740 = vunpack.c.l.b16 %v326
      %v741 = vunpack.c.h.b16 %v326
      %v742 = vunpack.c.l.b16 %v327
      %v743 = vunpack.c.h.b16 %v327
      %v744 = vunpack.c.l.b16 %v328
      %v745 = vunpack.c.h.b16 %v328
      %v746 = vunpack.c.l.b16 %v329
      %v747 = vunpack.c.h.b16 %v329
      %v748 = vunpack.c.l.b16 %v330
      %v749 = vunpack.c.h.b16 %v330
      %v750 = vunpack.c.l.b16 %v331
      %v751 = vunpack.c.h.b16 %v331
      %v752 = vunpack.c.l.b16 %v332
      %v753 = vunpack.c.h.b16 %v332
      %v754 = vunpack.c.l.b16 %v333
      %v755 = vunpack.c.h.b16 %v333
      %v756 = vunpack.c.l.b16 %v334
      %v757 = vunpack.c.h.b16 %v334
      %v758 = vunpack.c.l.b16 %v335
      %v759 = vunpack.c.h.b16 %v335
      %v760 = vunpack.c.l.b16 %v336
      %v761 = vunpack.c.h.b16 %v336
      %v762 = vunpack.c.l.b16 %v337
      %v763 = vunpack.c.h.b16 %v337
      %v764 = vunpack.c.l.b16 %v338
      %v765 = vunpack.c.h.b16 %v338
      %v766 = vunpack.c.l.b16 %v339
      %v767 = vunpack.c.h.b16 %v339
      %v768 = vunpack.c.l.b16 %v340
      %v769 = vunpack.c.h.b16 %v340
      %v770 = vunpack.c.l.b16 %v341
      %v771 = vunpack.c.h.b16 %v341
      %v772 = vunpack.c.l.b16 %v342
      %v773 = vunpack.c.h.b16 %v342
      %v774 = vunpack.c.l.b16 %v343
      %v775 = vunpack.c.h.b16 %v343
      %v776 = vunpack.c.l.b16 %v344
      %v777 = vunpack.c.h.b16 %v344
      %v778 = vunpack.c.l.b16 %v345
      %v779 = vunpack.c.h.b16 %v345
      %v780 = vunpack.c.l.b16 %v346
      %v781 = vunpack.c.h.b16 %v346
      %v782 = vunpack.c.l.b16 %v347
      %v783 = vunpack.c.h.b16 %v347
      %v784 = vunpack.c.l.b16 %v348
      %v785 = vunpack.c.h.b16 %v348
      %v786 = vunpack.c.l.b16 %v349
      %v787 = vunpack.c.h.b16 %v349
      %v788 = vunpack.c.l.b16 %v350
      %v789 = vunpack.c.h.b16 %v350
      %v790 = vunpack.c.l.b16 %v351
      %v791 = vunpack.c.h.b16 %v351
      %v792 = vunpack.c.l.b16 %v352
      %v793 = vunpack.c.h.b16 %v352
      %v794 = vunpack.c.l.b16 %v353
      %v795 = vunpack.c.h.b16 %v353
      %v796 = vunpack.c.l.b16 %v354
      %v797 = vunpack.c.h.b16 %v354
      %v798 = vunpack.c.l.b16 %v355
      %v799 = vunpack.c.h.b16 %v355
      %v800 = vunpack.c.l.b16 %v356
      %v801 = vunpack.c.h.b16 %v356
      %v802 = vunpack.c.l.b16 %v357
      %v803 = vunpack.c.h.b16 %v357
      %v804 = vunpack.c.l.b16 %v358
      %v805 = vunpack.c.h.b16 %v358
      %v806 = vunpack.c.l.b16 %v359
      %v807 = vunpack.c.h.b16 %v359
      %v808 = vunpack.c.l.b16 %v360
      %v809 = vunpack.c.h.b16 %v360
      %v810 = vunpack.c.l.b16 %v361
      %v811 = vunpack.c.h.b16 %v361
      %v812 = vunpack.c.l.b16 %v362
      %v813 = vunpack.c.h.b16 %v362
      %v814 = vunpack.c.l.b16 %v363
      %v815 = vunpack.c.h.b16 %v363
      %v816 = vunpack.c.l.b16 %v364
      %v817 = vunpack.c.h.b16 %v364
      %v818 = vunpack.c.l.b16 %v365
      %v819 = vunpack.c.h.b16 %v365
      %v820 = vunpack.c.l.b16 %v366
      %v821 = vunpack.c.h.b16 %v366
      %v822 = vunpack.c.l.b16 %v367
      %v823 = vunpack.c.h.b16 %v367
      %v824 = vunpack.c.l.b16 %v368
      %v825 = vunpack.c.h.b16 %v368
      %v826 = vunpack.c.l.b16 %v369
      %v827 = vunpack.c.h.b16 %v369
      %v828 = vunpack.c.l.b16 %v370
      %v829 = vunpack.c.h.b16 %v370
      %v830 = vunpack.c.l.b16 %v371
      %v831 = vunpack.c.h.b16 %v371
      %v832 = vunpack.c.l.b16 %v372
      %v833 = vunpack.c.h.b16 %v372
      %v834 = vunpack.c.l.b16 %v373
      %v835 = vunpack.c.h.b16 %v373
      %v836 = vunpack.c.l.b16 %v374
      %v837 = vunpack.c.h.b16 %v374
      %v838 = vunpack.c.l.b16 %v375
      %v839 = vunpack.c.h.b16 %v375
      %v840 = vunpack.c.l.b16 %v376
      %v841 = vunpack.c.h.b16 %v376
      %v842 = vunpack.c.l.b16 %v377
      %v843 = vunpack.c.h.b16 %v377
      %v844 = vunpack.c.l.b16 %v378
      %v845 = vunpack.c.h.b16 %v378
      %v846 = vunpack.c.l.b16 %v379
      %v847 = vunpack.c.h.b16 %v379
      %v848 = vunpack.c.l.b16 %v380
      %v849 = vunpack.c.h.b16 %v380
      %v850 = vunpack.c.l.b16 %v381
      %v851 = vunpack.c.h.b16 %v381
      %v852 = vunpack.c.l.b16 %v382
      %v853 = vunpack.c.h.b16 %v382
      %v854 = vunpack.c.l.b16 %v383
      %v855 = vunpack.c.h.b16 %v383
      %v856 = vunpack.c.l.b16 %v384
      %v857 = vunpack.c.h.b16 %v384
      %v858 = vunpack.c.l.b16 %v385
      %v859 = vunpack.c.h.b16 %v385
      %v860 = vunpack.c.l.b16 %v386
      %v861 = vunpack.c.h.b16 %v386
      %v862 = vunpack.c.l.b16 %v387
      %v863 = vunpack.c.h.b16 %v387
      %v864 = vunpack.c.l.b16 %v388
      %v865 = vunpack.c.h.b16 %v388
      %v866 = vunpack.c.l.b16 %v389
      %v867 = vunpack.c.h.b16 %v389
      %v868 = vunpack.c.l.b16 %v390
      %v869 = vunpack.c.h.b16 %v390
      %v870 = vunpack.c.l.b16 %v391
      %v871 = vunpack.c.h.b16 %v391
      %v872 = vunpack.c.l.b16 %v392
      %v873 = vunpack.c.h.b16 %v392
      %v874 = vunpack.c.l.b16 %v393
      %v875 = vunpack.c.h.b16 %v393
      %v876 = vunpack.c.l.b16 %v394
      %v877 = vunpack.c.h.b16 %v394
      %v878 = vunpack.c.l.b16 %v395
      %v879 = vunpack.c.h.b16 %v395
      %v880 = vunpack.c.l.b16 %v396
      %v881 = vunpack.c.h.b16 %v396
      %v882 = vunpack.c.l.b16 %v397
      %v883 = vunpack.c.h.b16 %v397
      %v884 = vunpack.c.l.b16 %v398
      %v885 = vunpack.c.h.b16 %v398
      %v886 = vunpack.c.l.b16 %v399
      %v887 = vunpack.c.h.b16 %v399
      %v888 = vunpack.c.l.b16 %v400
      %v889 = vunpack.c.h.b16 %v400
      %v890 = vunpack.c.l.b16 %v401
      %v891 = vunpack.c.h.b16 %v401
      %v892 = vunpack.c.l.b16 %v402
      %v893 = vunpack.c.h.b16 %v402
      %v894 = vunpack.c.l.b16 %v403
      %v895 = vunpack.c.h.b16 %v403
      %v896 = vunpack.c.l.b16 %v404
      %v897 = vunpack.c.h.b16 %v404
      %v898 = vunpack.c.l.b16 %v405
      %v899 = vunpack.c.h.b16 %v405
      %v900 = vunpack.c.l.b16 %v406
      %v901 = vunpack.c.h.b16 %v406
      %v902 = vunpack.c.l.b16 %v407
      %v903 = vunpack.c.h.b16 %v407
      %v904 = vunpack.c.l.b16 %v408
      %v905 = vunpack.c.h.b16 %v408
      %v906 = vunpack.c.l.b16 %v409
      %v907 = vunpack.c.h.b16 %v409
      %v908 = vunpack.c.l.b16 %v410
      %v909 = vunpack.c.h.b16 %v410
      %v910 = vunpack.c.l.b16 %v411
      %v911 = vunpack.c.h.b16 %v411
      %v912 = vunpack.c.l.b16 %v412
      %v913 = vunpack.c.h.b16 %v412
      %v914 = vunpack.c.l.b16 %v413
      %v915 = vunpack.c.h.b16 %v413
      %v916 = vunpack.c.l.b16 %v414
      %v917 = vunpack.c.h.b16 %v414
      %v918 = vunpack.c.l.b16 %v415
      %v919 = vunpack.c.h.b16 %v415
      %v920 = vunpack.c.l.b16 %v416
      %v921 = vunpack.c.h.b16 %v416
      %v922 = vunpack.c.l.b16 %v417
      %v923 = vunpack.c.h.b16 %v417
      %v924 = vunpack.c.l.b16 %v418
      %v925 = vunpack.c.h.b16 %v418
      %v926 = vunpack.c.l.b16 %v419
      %v927 = vunpack.c.h.b16 %v419
      %v928 = vunpack.c.l.b16 %v420
      %v929 = vunpack.c.h.b16 %v420
      %v930 = vunpack.c.l.b16 %v421
      %v931 = vunpack.c.h.b16 %v421
      %v932 = vunpack.c.l.b16 %v422
      %v933 = vunpack.c.h.b16 %v422
      %v934 = vunpack.c.l.b16 %v423
      %v935 = vunpack.c.h.b16 %v423
      %v936 = vunpack.c.l.b16 %v424
      %v937 = vunpack.c.h.b16 %v424
      %v938 = vunpack.c.l.b16 %v425
      %v939 = vunpack.c.h.b16 %v425
      %v940 = vunpack.c.l.b16 %v426
      %v941 = vunpack.c.h.b16 %v426
      %v942 = vunpack.c.l.b16 %v427
      %v943 = vunpack.c.h.b16 %v427
      %v944 = vunpack.c.l.b16 %v428
      %v945 = vunpack.c.h.b16 %v428
      %v946 = vunpack.c.l.b16 %v429
      %v947 = vunpack.c.h.b16 %v429
      %v948 = vunpack.c.l.b16 %v430
      %v949 = vunpack.c.h.b16 %v430
      %v950 = vunpack.c.l.b16 %v431
      %v951 = vunpack.c.h.b16 %v431
      %v952 = vunpack.c.l.b16 %v432
      %v953 = vunpack.c.h.b16 %v432
      %v954 = vunpack.c.l.b16 %v433
      %v955 = vunpack.c.h.b16 %v433
      %v956 = vunpack.c.l.b16 %v434
      %v957 = vunpack.c.h.b16 %v434
      %v958 = vunpack.c.l.b16 %v435
      %v959 = vunpack.c.h.b16 %v435
      %v960 = vunpack.c.l.b16 %v436
      %v961 = vunpack.c.h.b16 %v436
      %v962 = vunpack.c.l.b16 %v437
      %v963 = vunpack.c.h.b16 %v437
      %v964 = vunpack.c.l.b16 %v438
      %v965 = vunpack.c.h.b16 %v438
      %v966 = vunpack.c.l.b16 %v439
      %v967 = vunpack.c.h.b16 %v439
      %v968 = vunpack.c.l.b16 %v440
      %v969 = vunpack.c.h.b16 %v440
      %v970 = vunpack.c.l.b16 %v441
      %v971 = vunpack.c.h.b16 %v441
      %v972 = vunpack.c.l.b16 %v442
      %v973 = vunpack.c.h.b16 %v442
      %v974 = vunpack.c.l.b16 %v443
      %v975 = vunpack.c.h.b16 %v443
      %v976 = vunpack.c.l.b16 %v444
      %v977 = vunpack.c.h.b16 %v444
      %v978 = vunpack.c.l.b16 %v445
      %v979 = vunpack.c.h.b16 %v445
      %v980 = vunpack.c.l.b16 %v446
      %v981 = vunpack.c.h.b16 %v446
      %v982 = vunpack.c.l.b16 %v447
      %v983 = vunpack.c.h.b16 %v447
      %v984 = vunpack.c.l.b16 %v448
      %v985 = vunpack.c.h.b16 %v448
      %v986 = vunpack.c.l.b16 %v449
      %v987 = vunpack.c.h.b16 %v449
      %v988 = vunpack.c.l.b16 %v450
      %v989 = vunpack.c.h.b16 %v450
      %v990 = vunpack.c.l.b16 %v451
      %v991 = vunpack.c.h.b16 %v451
      %v992 = vunpack.c.l.b16 %v452
      %v993 = vunpack.c.h.b16 %v452
      %v994 = vunpack.c.l.b16 %v453
      %v995 = vunpack.c.h.b16 %v453
      %v996 = vunpack.c.l.b16 %v454
      %v997 = vunpack.c.h.b16 %v454
      %v998 = vunpack.c.l.b16 %v455
      %v999 = vunpack.c.h.b16 %v455
      %v1000 = vunpack.c.l.b16 %v456
      %v1001 = vunpack.c.h.b16 %v456
      %v1002 = vunpack.c.l.b16 %v457
      %v1003 = vunpack.c.h.b16 %v457
      %v1004 = vunpack.c.l.b16 %v458
      %v1005 = vunpack.c.h.b16 %v458
      %v1006 = vunpack.c.l.b16 %v459
      %v1007 = vunpack.c.h.b16 %v459
      %v1008 = vunpack.c.l.b16 %v460
      %v1009 = vunpack.c.h.b16 %v460
      %v1010 = vunpack.c.l.b16 %v461
      %v1011 = vunpack.c.h.b16 %v461
      %v1012 = vunpack.c.l.b16 %v462
      %v1013 = vunpack.c.h.b16 %v462
      %v1014 = vunpack.c.l.b16 %v463
      %v1015 = vunpack.c.h.b16 %v463
      %v1016 = vunpack.c.l.b16 %v464
      %v1017 = vunpack.c.h.b16 %v464
      %v1018 = vunpack.c.l.b16 %v465
      %v1019 = vunpack.c.h.b16 %v465
      %v1020 = vunpack.c.l.b16 %v466
      %v1021 = vunpack.c.h.b16 %v466
      %v1022 = vunpack.c.l.b16 %v467
      %v1023 = vunpack.c.h.b16 %v467
      %v1024 = vunpack.c.l.b16 %v468
      %v1025 = vunpack.c.h.b16 %v468
      %v1026 = vunpack.c.l.b16 %v469
      %v1027 = vunpack.c.h.b16 %v469
      %v1028 = vunpack.c.l.b16 %v470
      %v1029 = vunpack.c.h.b16 %v470
      %v1030 = vunpack.c.l.b16 %v471
      %v1031 = vunpack.c.h.b16 %v471
      %v1032 = vunpack.c.l.b16 %v472
      %v1033 = vunpack.c.h.b16 %v472
      %v1034 = vunpack.c.l.b16 %v473
      %v1035 = vunpack.c.h.b16 %v473
      %v1036 = vunpack.c.l.b16 %v474
      %v1037 = vunpack.c.h.b16 %v474
      %v1038 = vunpack.c.l.b16 %v475
      %v1039 = vunpack.c.h.b16 %v475
      %v1040 = vunpack.c.l.b16 %v476
      %v1041 = vunpack.c.h.b16 %v476
      %v1042 = vunpack.c.l.b16 %v477
      %v1043 = vunpack.c.h.b16 %v477
      %v1044 = vunpack.c.l.b16 %v478
      %v1045 = vunpack.c.h.b16 %v478
      %v1046 = vunpack.c.l.b16 %v479
      %v1047 = vunpack.c.h.b16 %v479
      %v1048 = vunpack.c.l.b16 %v480
      %v1049 = vunpack.c.h.b16 %v480
      %v1050 = vunpack.c.l.b16 %v481
      %v1051 = vunpack.c.h.b16 %v481
      %v1052 = vunpack.c.l.b16 %v482
      %v1053 = vunpack.c.h.b16 %v482
      %v1054 = vunpack.c.l.b16 %v483
      %v1055 = vunpack.c.h.b16 %v483
      %v1056 = vunpack.c.l.b16 %v484
      %v1057 = vunpack.c.h.b16 %v484
      %v1058 = vunpack.c.l.b16 %v485
      %v1059 = vunpack.c.h.b16 %v485
      %v1060 = vunpack.c.l.b16 %v486
      %v1061 = vunpack.c.h.b16 %v486
      %v1062 = vunpack.c.l.b16 %v487
      %v1063 = vunpack.c.h.b16 %v487
      %v1064 = vunpack.c.l.b16 %v488
      %v1065 = vunpack.c.h.b16 %v488
      %v1066 = vunpack.c.l.b16 %v489
      %v1067 = vunpack.c.h.b16 %v489
      %v1068 = vunpack.c.l.b16 %v490
      %v1069 = vunpack.c.h.b16 %v490
      %v1070 = vunpack.c.l.b16 %v491
      %v1071 = vunpack.c.h.b16 %v491
      %v1072 = vunpack.c.l.b16 %v492
      %v1073 = vunpack.c.h.b16 %v492
      %v1074 = vunpack.c.l.b16 %v493
      %v1075 = vunpack.c.h.b16 %v493
      %v1076 = vunpack.c.l.b16 %v494
      %v1077 = vunpack.c.h.b16 %v494
      %v1078 = vunpack.c.l.b16 %v495
      %v1079 = vunpack.c.h.b16 %v495
      %v1080 = vunpack.c.l.b16 %v496
      %v1081 = vunpack.c.h.b16 %v496
      %v1082 = vunpack.c.l.b16 %v497
      %v1083 = vunpack.c.h.b16 %v497
      %v1084 = vunpack.c.l.b16 %v498
      %v1085 = vunpack.c.h.b16 %v498
      %v1086 = vunpack.c.l.b16 %v499
      %v1087 = vunpack.c.h.b16 %v499
      %v1088 = vunpack.c.l.b16 %v500
      %v1089 = vunpack.c.h.b16 %v500
      %v1090 = vunpack.c.l.b16 %v501
      %v1091 = vunpack.c.h.b16 %v501
      %v1092 = vunpack.c.l.b16 %v502
      %v1093 = vunpack.c.h.b16 %v502
      %v1094 = vunpack.c.l.b16 %v503
      %v1095 = vunpack.c.h.b16 %v503
      %v1096 = vunpack.c.l.b16 %v504
      %v1097 = vunpack.c.h.b16 %v504
      %v1098 = vunpack.c.l.b16 %v505
      %v1099 = vunpack.c.h.b16 %v505
      %v1100 = vunpack.c.l.b16 %v506
      %v1101 = vunpack.c.h.b16 %v506
      %v1102 = vunpack.c.l.b16 %v507
      %v1103 = vunpack.c.h.b16 %v507
      %v1104 = vpack.c.b16 %v726, %v720
      %v1105 = vpack.c.b16 %v727, %v721
      %v1106 = vpack.c.b16 %v728, %v722
      %v1107 = vpack.c.b16 %v729, %v723
      %v1108 = vpack.c.b16 %v730, %v724
      %v1109 = vpack.c.b16 %v731, %v725
      %v1110 = vpack.c.b16 %v738, %v732
      %v1111 = vpack.c.b16 %v739, %v733
      %v1112 = vpack.c.b16 %v740, %v734
      %v1113 = vpack.c.b16 %v741, %v735
      %v1114 = vpack.c.b16 %v742, %v736
      %v1115 = vpack.c.b16 %v743, %v737
      %v1116 = vpack.c.b16 %v750, %v744
      %v1117 = vpack.c.b16 %v751, %v745
      %v1118 = vpack.c.b16 %v752, %v746
      %v1119 = vpack.c.b16 %v753, %v747
      %v1120 = vpack.c.b16 %v754, %v748
      %v1121 = vpack.c.b16 %v755, %v749
      %v1122 = vpack.c.b16 %v762, %v756
      %v1123 = vpack.c.b16 %v763, %v757
      %v1124 = vpack.c.b16 %v764, %v758
      %v1125 = vpack.c.b16 %v765, %v759
      %v1126 = vpack.c.b16 %v766, %v760
      %v1127 = vpack.c.b16 %v767, %v761
      %v1128 = vpack.c.b16 %v774, %v768
      %v1129 = vpack.c.b16 %v775, %v769
      %v1130 = vpack.c.b16 %v776, %v770
      %v1131 = vpack.c.b16 %v777, %v771
      %v1132 = vpack.c.b16 %v778, %v772
      %v1133 = vpack.c.b16 %v779, %v773
      %v1134 = vpack.c.b16 %v786, %v780
      %v1135 = vpack.c.b16 %v787, %v781
      %v1136 = vpack.c.b16 %v788, %v782
      %v1137 = vpack.c.b16 %v789, %v783
      %v1138 = vpack.c.b16 %v790, %v784
      %v1139 = vpack.c.b16 %v791, %v785
      %v1140 = vpack.c.b16 %v798, %v792
      %v1141 = vpack.c.b16 %v799, %v793
      %v1142 = vpack.c.b16 %v800, %v794
      %v1143 = vpack.c.b16 %v801, %v795
      %v1144 = vpack.c.b16 %v802, %v796
      %v1145 = vpack.c.b16 %v803, %v797
      %v1146 = vpack.c.b16 %v810, %v804
      %v1147 = vpack.c.b16 %v811, %v805
      %v1148 = vpack.c.b16 %v812, %v806
      %v1149 = vpack.c.b16 %v813, %v807
      %v1150 = vpack.c.b16 %v814, %v808
      %v1151 = vpack.c.b16 %v815, %v809
      %v1152 = vpack.c.b16 %v822, %v816
      %v1153 = vpack.c.b16 %v823, %v817
      %v1154 = vpack.c.b16 %v824, %v818
      %v1155 = vpack.c.b16 %v825, %v819
      %v1156 = vpack.c.b16 %v826, %v820
      %v1157 = vpack.c.b16 %v827, %v821
      %v1158 = vpack.c.b16 %v834, %v828
      %v1159 = vpack.c.b16 %v835, %v829
      %v1160 = vpack.c.b16 %v836, %v830
      %v1161 = vpack.c.b16 %v837, %v831
      %v1162 = vpack.c.b16 %v838, %v832
      %v1163 = vpack.c.b16 %v839, %v833
      %v1164 = vpack.c.b16 %v846, %v840
      %v1165 = vpack.c.b16 %v847, %v841
      %v1166 = vpack.c.b16 %v848, %v842
      %v1167 = vpack.c.b16 %v849, %v843
      %v1168 = vpack.c.b16 %v850, %v844
      %v1169 = vpack.c.b16 %v851, %v845
      %v1170 = vpack.c.b16 %v858, %v852
      %v1171 = vpack.c.b16 %v859, %v853
      %v1172 = vpack.c.b16 %v860, %v854
      %v1173 = vpack.c.b16 %v861, %v855
      %v1174 = vpack.c.b16 %v862, %v856
      %v1175 = vpack.c.b16 %v863, %v857
      %v1176 = vpack.c.b16 %v870, %v864
      %v1177 = vpack.c.b16 %v871, %v865
      %v1178 = vpack.c.b16 %v872, %v866
      %v1179 = vpack.c.b16 %v873, %v867
      %v1180 = vpack.c.b16 %v874, %v868
      %v1181 = vpack.c.b16 %v875, %v869
      %v1182 = vpack.c.b16 %v882, %v876
      %v1183 = vpack.c.b16 %v883, %v877
      %v1184 = vpack.c.b16 %v884, %v878
      %v1185 = vpack.c.b16 %v885, %v879
      %v1186 = vpack.c.b16 %v886, %v880
      %v1187 = vpack.c.b16 %v887, %v881
      %v1188 = vpack.c.b16 %v894, %v888
      %v1189 = vpack.c.b16 %v895, %v889
      %v1190 = vpack.c.b16 %v896, %v890
      %v1191 = vpack.c.b16 %v897, %v891
      %v1192 = vpack.c.b16 %v898, %v892
      %v1193 = vpack.c.b16 %v899, %v893
      %v1194 = vpack.c.b16 %v906, %v900
      %v1195 = vpack.c.b16 %v907, %v901
      %v1196 = vpack.c.b16 %v908, %v902
      %v1197 = vpack.c.b16 %v909, %v903
      %v1198 = vpack.c.b16 %v910, %v904
      %v1199 = vpack.c.b16 %v911, %v905
      %v1200 = vpack.c.b16 %v918, %v912
      %v1201 = vpack.c.b16 %v919, %v913
      %v1202 = vpack.c.b16 %v920, %v914
      %v1203 = vpack.c.b16 %v921, %v915
      %v1204 = vpack.c.b16 %v922, %v916
      %v1205 = vpack.c.b16 %v923, %v917
      %v1206 = vpack.c.b16 %v930, %v924
      %v1207 = vpack.c.b16 %v931, %v925
      %v1208 = vpack.c.b16 %v932, %v926
      %v1209 = vpack.c.b16 %v933, %v927
      %v1210 = vpack.c.b16 %v934, %v928
      %v1211 = vpack.c.b16 %v935, %v929
      %v1212 = vpack.c.b16 %v942, %v936
      %v1213 = vpack.c.b16 %v943, %v937
      %v1214 = vpack.c.b16 %v944, %v938
      %v1215 = vpack.c.b16 %v945, %v939
      %v1216 = vpack.c.b16 %v946, %v940
      %v1217 = vpack.c.b16 %v947, %v941
      %v1218 = vpack.c.b16 %v954, %v948
      %v1219 = vpack.c.b16 %v955, %v949
      %v1220 = vpack.c.b16 %v956, %v950
      %v1221 = vpack.c.b16 %v957, %v951
      %v1222 = vpack.c.b16 %v958, %v952
      %v1223 = vpack.c.b16 %v959, %v953
      %v1224 = vpack.c.b16 %v966, %v960
      %v1225 = vpack.c.b16 %v967, %v961
      %v1226 = vpack.c.b16 %v968, %v962
      %v1227 = vpack.c.b16 %v969, %v963
      %v1228 = vpack.c.b16 %v970, %v964
      %v1229 = vpack.c.b16 %v971, %v965
      %v1230 = vpack.c.b16 %v978, %v972
      %v1231 = vpack.c.b16 %v979, %v973
      %v1232 = vpack.c.b16 %v980, %v974
      %v1233 = vpack.c.b16 %v981, %v975
      %v1234 = vpack.c.b16 %v982, %v976
      %v1235 = vpack.c.b16 %v983, %v977
      %v1236 = vpack.c.b16 %v990, %v984
      %v1237 = vpack.c.b16 %v991, %v985
      %v1238 = vpack.c.b16 %v992, %v986
      %v1239 = vpack.c.b16 %v993, %v987
      %v1240 = vpack.c.b16 %v994, %v988
      %v1241 = vpack.c.b16 %v995, %v989
      %v1242 = vpack.c.b16 %v1002, %v996
      %v1243 = vpack.c.b16 %v1003, %v997
      %v1244 = vpack.c.b16 %v1004, %v998
      %v1245 = vpack.c.b16 %v1005, %v999
      %v1246 = vpack.c.b16 %v1006, %v1000
      %v1247 = vpack.c.b16 %v1007, %v1001
      %v1248 = vpack.c.b16 %v1014, %v1008
      %v1249 = vpack.c.b16 %v1015, %v1009
      %v1250 = vpack.c.b16 %v1016, %v1010
      %v1251 = vpack.c.b16 %v1017, %v1011
      %v1252 = vpack.c.b16 %v1018, %v1012
      %v1253 = vpack.c.b16 %v1019, %v1013
      %v1254 = vpack.c.b16 %v1026, %v1020
      %v1255 = vpack.c.b16 %v1027, %v1021
      %v1256 = vpack.c.b16 %v1028, %v1022
      %v1257 = vpack.c.b16 %v1029, %v1023
      %v1258 = vpack.c.b16 %v1030, %v1024
      %v1259 = vpack.c.b16 %v1031, %v1025
      %v1260 = vpack.c.b16 %v1038, %v1032
      %v1261 = vpack.c.b16 %v1039, %v1033
      %v1262 = vpack.c.b16 %v1040, %v1034
      %v1263 = vpack.c.b16 %v1041, %v1035
      %v1264 = vpack.c.b16 %v1042, %v1036
      %v1265 = vpack.c.b16 %v1043, %v1037
      %v1266 = vpack.c.b16 %v1050, %v1044
      %v1267 = vpack.c.b16 %v1051, %v1045
      %v1268 = vpack.c.b16 %v1052, %v1046
      %v1269 = vpack.c.b16 %v1053, %v1047
      %v1270 = vpack.c.b16 %v1054, %v1048
      %v1271 = vpack.c.b16 %v1055, %v1049
      %v1272 = vpack.c.b16 %v1062, %v1056
      %v1273 = vpack.c.b16 %v1063, %v1057
      %v1274 = vpack.c.b16 %v1064, %v1058
      %v1275 = vpack.c.b16 %v1065, %v1059
      %v1276 = vpack.c.b16 %v1066, %v1060
      %v1277 = vpack.c.b16 %v1067, %v1061
      %v1278 = vpack.c.b16 %v1074, %v1068
      %v1279 = vpack.c.b16 %v1075, %v1069
      %v1280 = vpack.c.b16 %v1076, %v1070
      %v1281 = vpack.c.b16 %v1077, %v1071
      %v1282 = vpack.c.b16 %v1078, %v1072
      %v1283 = vpack.c.b16 %v1079, %v1073
      %v1284 = vpack.c.b16 %v1086, %v1080
      %v1285 = vpack.c.b16 %v1087, %v1081
      %v1286 = vpack.c.b16 %v1088, %v1082
      %v1287 = vpack.c.b16 %v1089, %v1083
      %v1288 = vpack.c.b16 %v1090, %v1084
      %v1289 = vpack.c.b16 %v1091, %v1085
      %v1290 = vpack.c.b16 %v1098, %v1092
      %v1291 = vpack.c.b16 %v1099, %v1093
      %v1292 = vpack.c.b16 %v1100, %v1094
      %v1293 = vpack.c.b16 %v1101, %v1095
      %v1294 = vpack.c.b16 %v1102, %v1096
      %v1295 = vpack.c.b16 %v1103, %v1097
      %1488 = vmatprep.subr.bf16.mxu0 %v1105
      %1489 = vmatpush1.bf16.msra.mxu0 %v1104
      %1490 = vmatprep.subr.bf16.mxu0 %v1111
      %1491 = vmatpush1.bf16.msra.mxu0 %v1110
      %1492 = vmatprep.subr.bf16.mxu0 %v1117
      %1493 = vmatpush1.bf16.msra.mxu0 %v1116
      %1494 = vmatprep.subr.bf16.mxu0 %v1123
      %1495 = vmatpush1.bf16.msra.mxu0 %v1122
      %1496 = vmatprep.subr.bf16.mxu0 %v1129
      %1497 = vmatpush1.bf16.msra.mxu0 %v1128
      %1498 = vmatprep.subr.bf16.mxu0 %v1135
      %1499 = vmatpush1.bf16.msra.mxu0 %v1134
      %1500 = vmatprep.subr.bf16.mxu0 %v1141
      %1501 = vmatpush1.bf16.msra.mxu0 %v1140
      %1502 = vmatprep.subr.bf16.mxu0 %v1147
      %1503 = vmatpush1.bf16.msra.mxu0 %v1146
      %1504 = vmatprep.subr.bf16.mxu0 %v1153
      %1505 = vmatpush1.bf16.msra.mxu0 %v1152
      %1506 = vmatprep.subr.bf16.mxu0 %v1159
      %1507 = vmatpush1.bf16.msra.mxu0 %v1158
      %1508 = vmatprep.subr.bf16.mxu0 %v1165
      %1509 = vmatpush1.bf16.msra.mxu0 %v1164
      %1510 = vmatprep.subr.bf16.mxu0 %v1171
      %1511 = vmatpush1.bf16.msra.mxu0 %v1170
      %1512 = vmatprep.subr.bf16.mxu0 %v1177
      %1513 = vmatpush1.bf16.msra.mxu0 %v1176
      %1514 = vmatprep.subr.bf16.mxu0 %v1183
      %1515 = vmatpush1.bf16.msra.mxu0 %v1182
      %1516 = vmatprep.subr.bf16.mxu0 %v1189
      %1517 = vmatpush1.bf16.msra.mxu0 %v1188
      %1518 = vmatprep.subr.bf16.mxu0 %v1195
      %1519 = vmatpush1.bf16.msra.mxu0 %v1194
      %1520 = vmatprep.mubr.bf16.mxu0 %v521
      %1521 = vmatmul.mubr.bf16.gmra.mrb[0].mxu0 %v520
      %v1522 = vpop.f32.mrb[0].mxu0
      %v1523 = vadd.f32 0.0, %v1522
      %v1524 = vpop.f32.mrb[0].mxu0
      %v1525 = vadd.f32 0.0, %v1524
      %v1526 = vpop.f32.mrb[0].mxu0
      %v1527 = vadd.f32 0.0, %v1526
      %v1528 = vpop.f32.mrb[0].mxu0
      %v1529 = vadd.f32 0.0, %v1528
      %1530 = vdwg.mxu0
      %1531 = vmatprep.subr.bf16.mxu0 %v1201
      %1532 = vmatpush1.bf16.msra.mxu0 %v1200
      %1533 = vmatprep.subr.bf16.mxu0 %v1207
      %1534 = vmatpush1.bf16.msra.mxu0 %v1206
      %1535 = vmatprep.subr.bf16.mxu0 %v1213
      %1536 = vmatpush1.bf16.msra.mxu0 %v1212
      %1537 = vmatprep.subr.bf16.mxu0 %v1219
      %1538 = vmatpush1.bf16.msra.mxu0 %v1218
      %1539 = vmatprep.subr.bf16.mxu0 %v1225
      %1540 = vmatpush1.bf16.msra.mxu0 %v1224
      %1541 = vmatprep.subr.bf16.mxu0 %v1231
      %1542 = vmatpush1.bf16.msra.mxu0 %v1230
      %1543 = vmatprep.subr.bf16.mxu0 %v1237
      %1544 = vmatpush1.bf16.msra.mxu0 %v1236
      %1545 = vmatprep.subr.bf16.mxu0 %v1243
      %1546 = vmatpush1.bf16.msra.mxu0 %v1242
      %1547 = vmatprep.subr.bf16.mxu0 %v1249
      %1548 = vmatpush1.bf16.msra.mxu0 %v1248
      %1549 = vmatprep.subr.bf16.mxu0 %v1255
      %1550 = vmatpush1.bf16.msra.mxu0 %v1254
      %1551 = vmatprep.subr.bf16.mxu0 %v1261
      %1552 = vmatpush1.bf16.msra.mxu0 %v1260
      %1553 = vmatprep.subr.bf16.mxu0 %v1267
      %1554 = vmatpush1.bf16.msra.mxu0 %v1266
      %1555 = vmatprep.subr.bf16.mxu0 %v1273
      %1556 = vmatpush1.bf16.msra.mxu0 %v1272
      %1557 = vmatprep.subr.bf16.mxu0 %v1279
      %1558 = vmatpush1.bf16.msra.mxu0 %v1278
      %1559 = vmatprep.subr.bf16.mxu0 %v1285
      %1560 = vmatpush1.bf16.msra.mxu0 %v1284
      %1561 = vmatprep.subr.bf16.mxu0 %v1291
      %1562 = vmatpush1.bf16.msra.mxu0 %v1290
      %1563 = vmatprep.mubr.bf16.mxu0 %v523
      %1564 = vmatmul.mubr.bf16.gmra.mrb[0].mxu0 %v522
      %v1565 = vpop.f32.mrb[0].mxu0
      %v1566 = vadd.f32 %v1523, %v1565
      %v1567 = vpop.f32.mrb[0].mxu0
      %v1568 = vadd.f32 %v1525, %v1567
      %v1569 = vpop.f32.mrb[0].mxu0
      %v1570 = vadd.f32 %v1527, %v1569
      %v1571 = vpop.f32.mrb[0].mxu0
      %v1572 = vadd.f32 %v1529, %v1571
      %1573 = vdwg.mxu0
      %1574 = vmatprep.subr.bf16.mxu0 %v1107
      %1575 = vmatpush1.bf16.msra.mxu0 %v1106
      %1576 = vmatprep.subr.bf16.mxu0 %v1113
      %1577 = vmatpush1.bf16.msra.mxu0 %v1112
      %1578 = vmatprep.subr.bf16.mxu0 %v1119
      %1579 = vmatpush1.bf16.msra.mxu0 %v1118
      %1580 = vmatprep.subr.bf16.mxu0 %v1125
      %1581 = vmatpush1.bf16.msra.mxu0 %v1124
      %1582 = vmatprep.subr.bf16.mxu0 %v1131
      %1583 = vmatpush1.bf16.msra.mxu0 %v1130
      %1584 = vmatprep.subr.bf16.mxu0 %v1137
      %1585 = vmatpush1.bf16.msra.mxu0 %v1136
      %1586 = vmatprep.subr.bf16.mxu0 %v1143
      %1587 = vmatpush1.bf16.msra.mxu0 %v1142
      %1588 = vmatprep.subr.bf16.mxu0 %v1149
      %1589 = vmatpush1.bf16.msra.mxu0 %v1148
      %1590 = vmatprep.subr.bf16.mxu0 %v1155
      %1591 = vmatpush1.bf16.msra.mxu0 %v1154
      %1592 = vmatprep.subr.bf16.mxu0 %v1161
      %1593 = vmatpush1.bf16.msra.mxu0 %v1160
      %1594 = vmatprep.subr.bf16.mxu0 %v1167
      %1595 = vmatpush1.bf16.msra.mxu0 %v1166
      %1596 = vmatprep.subr.bf16.mxu0 %v1173
      %1597 = vmatpush1.bf16.msra.mxu0 %v1172
      %1598 = vmatprep.subr.bf16.mxu0 %v1179
      %1599 = vmatpush1.bf16.msra.mxu0 %v1178
      %1600 = vmatprep.subr.bf16.mxu0 %v1185
      %1601 = vmatpush1.bf16.msra.mxu0 %v1184
      %1602 = vmatprep.subr.bf16.mxu0 %v1191
      %1603 = vmatpush1.bf16.msra.mxu0 %v1190
      %1604 = vmatprep.subr.bf16.mxu0 %v1197
      %1605 = vmatpush1.bf16.msra.mxu0 %v1196
      %1606 = vmatprep.mubr.bf16.mxu0 %v521
      %1607 = vmatmul.mubr.bf16.gmra.mrb[0].mxu0 %v520
      %v1608 = vpop.f32.mrb[0].mxu0
      %v1609 = vadd.f32 0.0, %v1608
      %v1610 = vpop.f32.mrb[0].mxu0
      %v1611 = vadd.f32 0.0, %v1610
      %v1612 = vpop.f32.mrb[0].mxu0
      %v1613 = vadd.f32 0.0, %v1612
      %v1614 = vpop.f32.mrb[0].mxu0
      %v1615 = vadd.f32 0.0, %v1614
      %1616 = vdwg.mxu0
      %1617 = vmatprep.subr.bf16.mxu0 %v1203
      %1618 = vmatpush1.bf16.msra.mxu0 %v1202
      %1619 = vmatprep.subr.bf16.mxu0 %v1209
      %1620 = vmatpush1.bf16.msra.mxu0 %v1208
      %1621 = vmatprep.subr.bf16.mxu0 %v1215
      %1622 = vmatpush1.bf16.msra.mxu0 %v1214
      %1623 = vmatprep.subr.bf16.mxu0 %v1221
      %1624 = vmatpush1.bf16.msra.mxu0 %v1220
      %1625 = vmatprep.subr.bf16.mxu0 %v1227
      %1626 = vmatpush1.bf16.msra.mxu0 %v1226
      %1627 = vmatprep.subr.bf16.mxu0 %v1233
      %1628 = vmatpush1.bf16.msra.mxu0 %v1232
      %1629 = vmatprep.subr.bf16.mxu0 %v1239
      %1630 = vmatpush1.bf16.msra.mxu0 %v1238
      %1631 = vmatprep.subr.bf16.mxu0 %v1245
      %1632 = vmatpush1.bf16.msra.mxu0 %v1244
      %1633 = vmatprep.subr.bf16.mxu0 %v1251
      %1634 = vmatpush1.bf16.msra.mxu0 %v1250
      %1635 = vmatprep.subr.bf16.mxu0 %v1257
      %1636 = vmatpush1.bf16.msra.mxu0 %v1256
      %1637 = vmatprep.subr.bf16.mxu0 %v1263
      %1638 = vmatpush1.bf16.msra.mxu0 %v1262
      %1639 = vmatprep.subr.bf16.mxu0 %v1269
      %1640 = vmatpush1.bf16.msra.mxu0 %v1268
      %1641 = vmatprep.subr.bf16.mxu0 %v1275
      %1642 = vmatpush1.bf16.msra.mxu0 %v1274
      %1643 = vmatprep.subr.bf16.mxu0 %v1281
      %1644 = vmatpush1.bf16.msra.mxu0 %v1280
      %1645 = vmatprep.subr.bf16.mxu0 %v1287
      %1646 = vmatpush1.bf16.msra.mxu0 %v1286
      %1647 = vmatprep.subr.bf16.mxu0 %v1293
      %1648 = vmatpush1.bf16.msra.mxu0 %v1292
      %1649 = vmatprep.mubr.bf16.mxu0 %v523
      %1650 = vmatmul.mubr.bf16.gmra.mrb[0].mxu0 %v522
      %v1651 = vpop.f32.mrb[0].mxu0
      %v1652 = vadd.f32 %v1609, %v1651
      %v1653 = vpop.f32.mrb[0].mxu0
      %v1654 = vadd.f32 %v1611, %v1653
      %v1655 = vpop.f32.mrb[0].mxu0
      %v1656 = vadd.f32 %v1613, %v1655
      %v1657 = vpop.f32.mrb[0].mxu0
      %v1658 = vadd.f32 %v1615, %v1657
      %1659 = vdwg.mxu0
      %1660 = vmatprep.subr.bf16.mxu0 %v1109
      %1661 = vmatpush1.bf16.msra.mxu0 %v1108
      %1662 = vmatprep.subr.bf16.mxu0 %v1115
      %1663 = vmatpush1.bf16.msra.mxu0 %v1114
      %1664 = vmatprep.subr.bf16.mxu0 %v1121
      %1665 = vmatpush1.bf16.msra.mxu0 %v1120
      %1666 = vmatprep.subr.bf16.mxu0 %v1127
      %1667 = vmatpush1.bf16.msra.mxu0 %v1126
      %1668 = vmatprep.subr.bf16.mxu0 %v1133
      %1669 = vmatpush1.bf16.msra.mxu0 %v1132
      %1670 = vmatprep.subr.bf16.mxu0 %v1139
      %1671 = vmatpush1.bf16.msra.mxu0 %v1138
      %1672 = vmatprep.subr.bf16.mxu0 %v1145
      %1673 = vmatpush1.bf16.msra.mxu0 %v1144
      %1674 = vmatprep.subr.bf16.mxu0 %v1151
      %1675 = vmatpush1.bf16.msra.mxu0 %v1150
      %1676 = vmatprep.subr.bf16.mxu0 %v1157
      %1677 = vmatpush1.bf16.msra.mxu0 %v1156
      %1678 = vmatprep.subr.bf16.mxu0 %v1163
      %1679 = vmatpush1.bf16.msra.mxu0 %v1162
      %1680 = vmatprep.subr.bf16.mxu0 %v1169
      %1681 = vmatpush1.bf16.msra.mxu0 %v1168
      %1682 = vmatprep.subr.bf16.mxu0 %v1175
      %1683 = vmatpush1.bf16.msra.mxu0 %v1174
      %1684 = vmatprep.subr.bf16.mxu0 %v1181
      %1685 = vmatpush1.bf16.msra.mxu0 %v1180
      %1686 = vmatprep.subr.bf16.mxu0 %v1187
      %1687 = vmatpush1.bf16.msra.mxu0 %v1186
      %1688 = vmatprep.subr.bf16.mxu0 %v1193
      %1689 = vmatpush1.bf16.msra.mxu0 %v1192
      %1690 = vmatprep.subr.bf16.mxu0 %v1199
      %1691 = vmatpush1.bf16.msra.mxu0 %v1198
      %1692 = vmatprep.mubr.bf16.mxu0 %v521
      %1693 = vmatmul.mubr.bf16.gmra.mrb[0].mxu0 %v520
      %v1694 = vpop.f32.mrb[0].mxu0
      %v1695 = vadd.f32 0.0, %v1694
      %v1696 = vpop.f32.mrb[0].mxu0
      %v1697 = vadd.f32 0.0, %v1696
      %v1698 = vpop.f32.mrb[0].mxu0
      %v1699 = vadd.f32 0.0, %v1698
      %v1700 = vpop.f32.mrb[0].mxu0
      %v1701 = vadd.f32 0.0, %v1700
      %1702 = vdwg.mxu0
      %1703 = vmatprep.subr.bf16.mxu0 %v1205
      %1704 = vmatpush1.bf16.msra.mxu0 %v1204
      %1705 = vmatprep.subr.bf16.mxu0 %v1211
      %1706 = vmatpush1.bf16.msra.mxu0 %v1210
      %1707 = vmatprep.subr.bf16.mxu0 %v1217
      %1708 = vmatpush1.bf16.msra.mxu0 %v1216
      %1709 = vmatprep.subr.bf16.mxu0 %v1223
      %1710 = vmatpush1.bf16.msra.mxu0 %v1222
      %1711 = vmatprep.subr.bf16.mxu0 %v1229
      %1712 = vmatpush1.bf16.msra.mxu0 %v1228
      %1713 = vmatprep.subr.bf16.mxu0 %v1235
      %1714 = vmatpush1.bf16.msra.mxu0 %v1234
      %1715 = vmatprep.subr.bf16.mxu0 %v1241
      %1716 = vmatpush1.bf16.msra.mxu0 %v1240
      %1717 = vmatprep.subr.bf16.mxu0 %v1247
      %1718 = vmatpush1.bf16.msra.mxu0 %v1246
      %1719 = vmatprep.subr.bf16.mxu0 %v1253
      %1720 = vmatpush1.bf16.msra.mxu0 %v1252
      %1721 = vmatprep.subr.bf16.mxu0 %v1259
      %1722 = vmatpush1.bf16.msra.mxu0 %v1258
      %1723 = vmatprep.subr.bf16.mxu0 %v1265
      %1724 = vmatpush1.bf16.msra.mxu0 %v1264
      %1725 = vmatprep.subr.bf16.mxu0 %v1271
      %1726 = vmatpush1.bf16.msra.mxu0 %v1270
      %1727 = vmatprep.subr.bf16.mxu0 %v1277
      %1728 = vmatpush1.bf16.msra.mxu0 %v1276
      %1729 = vmatprep.subr.bf16.mxu0 %v1283
      %1730 = vmatpush1.bf16.msra.mxu0 %v1282
      %1731 = vmatprep.subr.bf16.mxu0 %v1289
      %1732 = vmatpush1.bf16.msra.mxu0 %v1288
      %1733 = vmatprep.subr.bf16.mxu0 %v1295
      %1734 = vmatpush1.bf16.msra.mxu0 %v1294
      %1735 = vmatprep.mubr.bf16.mxu0 %v523
      %1736 = vmatmul.mubr.bf16.gmra.mrb[0].mxu0 %v522
      %v1737 = vpop.f32.mrb[0].mxu0
      %v1738 = vadd.f32 %v1695, %v1737
      %v1739 = vpop.f32.mrb[0].mxu0
      %v1740 = vadd.f32 %v1697, %v1739
      %v1741 = vpop.f32.mrb[0].mxu0
      %v1742 = vadd.f32 %v1699, %v1741
      %v1743 = vpop.f32.mrb[0].mxu0
      %v1744 = vadd.f32 %v1701, %v1743
      %1745 = vdwg.mxu0
      %v1746 = vpack.c.bf16 %v1570, %v1566
      %v1747 = vpack.c.bf16 %v1572, %v1568
      %v1748 = vpack.c.bf16 %v1656, %v1652
      %v1749 = vpack.c.bf16 %v1658, %v1654
      %v1750 = vpack.c.bf16 %v1742, %v1738
      %v1751 = vpack.c.bf16 %v1744, %v1740
      %v1752 = vld [vmem:[%s3] sm:$0xff]
      %v1753 = vld [vmem:[%s3 + $0x8] sm:$0xff]
      %v1754 = vld [vmem:[%s3 + $0x10] sm:$0xff]
      %v1755 = vld [vmem:[%s3 + $0x18] sm:$0xff]
      %v1756 = vld [vmem:[%s3 + $0x20] sm:$0xff]
      %v1757 = vld [vmem:[%s3 + $0x28] sm:$0xff]
      %v1758 = vld [vmem:[%s3 + $0x30] sm:$0xff]
      %v1759 = vld [vmem:[%s3 + $0x38] sm:$0xff]
      %v1760 = vld [vmem:[%s3 + $0x40] sm:$0xff]
      %v1761 = vld [vmem:[%s3 + $0x48] sm:$0xff]
      %v1762 = vld [vmem:[%s3 + $0x50] sm:$0xff]
      %v1763 = vld [vmem:[%s3 + $0x58] sm:$0xff]
      %v1764 = vld [vmem:[%s3 + $0x60] sm:$0xff]
      %v1765 = vld [vmem:[%s3 + $0x68] sm:$0xff]
      %v1766 = vld [vmem:[%s3 + $0x70] sm:$0xff]
      %v1767 = vld [vmem:[%s3 + $0x78] sm:$0xff]
      %v1768 = vld [vmem:[%s3 + $0x80] sm:$0xff]
      %v1769 = vld [vmem:[%s3 + $0x88] sm:$0xff]
      %v1770 = vld [vmem:[%s3 + $0x90] sm:$0xff]
      %v1771 = vld [vmem:[%s3 + $0x98] sm:$0xff]
      %v1772 = vld [vmem:[%s3 + $0xa0] sm:$0xff]
      %v1773 = vld [vmem:[%s3 + $0xa8] sm:$0xff]
      %v1774 = vld [vmem:[%s3 + $0xb0] sm:$0xff]
      %v1775 = vld [vmem:[%s3 + $0xb8] sm:$0xff]
      %v1776 = vld [vmem:[%s3 + $0xc0] sm:$0xff]
      %v1777 = vld [vmem:[%s3 + $0xc8] sm:$0xff]
      %v1778 = vld [vmem:[%s3 + $0xd0] sm:$0xff]
      %v1779 = vld [vmem:[%s3 + $0xd8] sm:$0xff]
      %v1780 = vld [vmem:[%s3 + $0xe0] sm:$0xff]
      %v1781 = vld [vmem:[%s3 + $0xe8] sm:$0xff]
      %v1782 = vld [vmem:[%s3 + $0xf0] sm:$0xff]
      %v1783 = vld [vmem:[%s3 + $0xf8] sm:$0xff]
      %v1784 = vld [vmem:[%s3 + $0x100] sm:$0xff]
      %v1785 = vld [vmem:[%s3 + $0x108] sm:$0xff]
      %v1786 = vld [vmem:[%s3 + $0x110] sm:$0xff]
      %v1787 = vld [vmem:[%s3 + $0x118] sm:$0xff]
      %v1788 = vld [vmem:[%s3 + $0x120] sm:$0xff]
      %v1789 = vld [vmem:[%s3 + $0x128] sm:$0xff]
      %v1790 = vld [vmem:[%s3 + $0x130] sm:$0xff]
      %v1791 = vld [vmem:[%s3 + $0x138] sm:$0xff]
      %v1792 = vld [vmem:[%s3 + $0x140] sm:$0xff]
      %v1793 = vld [vmem:[%s3 + $0x148] sm:$0xff]
      %v1794 = vld [vmem:[%s3 + $0x150] sm:$0xff]
      %v1795 = vld [vmem:[%s3 + $0x158] sm:$0xff]
      %v1796 = vld [vmem:[%s3 + $0x160] sm:$0xff]
      %v1797 = vld [vmem:[%s3 + $0x168] sm:$0xff]
      %v1798 = vld [vmem:[%s3 + $0x170] sm:$0xff]
      %v1799 = vld [vmem:[%s3 + $0x178] sm:$0xff]
      %v1800 = vld [vmem:[%s3 + $0x180] sm:$0xff]
      %v1801 = vld [vmem:[%s3 + $0x188] sm:$0xff]
      %v1802 = vld [vmem:[%s3 + $0x190] sm:$0xff]
      %v1803 = vld [vmem:[%s3 + $0x198] sm:$0xff]
      %v1804 = vld [vmem:[%s3 + $0x1a0] sm:$0xff]
      %v1805 = vld [vmem:[%s3 + $0x1a8] sm:$0xff]
      %v1806 = vld [vmem:[%s3 + $0x1b0] sm:$0xff]
      %v1807 = vld [vmem:[%s3 + $0x1b8] sm:$0xff]
      %v1808 = vld [vmem:[%s3 + $0x1c0] sm:$0xff]
      %v1809 = vld [vmem:[%s3 + $0x1c8] sm:$0xff]
      %v1810 = vld [vmem:[%s3 + $0x1d0] sm:$0xff]
      %v1811 = vld [vmem:[%s3 + $0x1d8] sm:$0xff]
      %v1812 = vld [vmem:[%s3 + $0x1e0] sm:$0xff]
      %v1813 = vld [vmem:[%s3 + $0x1e8] sm:$0xff]
      %v1814 = vld [vmem:[%s3 + $0x1f0] sm:$0xff]
      %v1815 = vld [vmem:[%s3 + $0x1f8] sm:$0xff]
      %v1816 = vld [vmem:[%s3 + $0x200] sm:$0xff]
      %v1817 = vld [vmem:[%s3 + $0x208] sm:$0xff]
      %v1818 = vld [vmem:[%s3 + $0x210] sm:$0xff]
      %v1819 = vld [vmem:[%s3 + $0x218] sm:$0xff]
      %v1820 = vld [vmem:[%s3 + $0x220] sm:$0xff]
      %v1821 = vld [vmem:[%s3 + $0x228] sm:$0xff]
      %v1822 = vld [vmem:[%s3 + $0x230] sm:$0xff]
      %v1823 = vld [vmem:[%s3 + $0x238] sm:$0xff]
      %v1824 = vld [vmem:[%s3 + $0x240] sm:$0xff]
      %v1825 = vld [vmem:[%s3 + $0x248] sm:$0xff]
      %v1826 = vld [vmem:[%s3 + $0x250] sm:$0xff]
      %v1827 = vld [vmem:[%s3 + $0x258] sm:$0xff]
      %v1828 = vld [vmem:[%s3 + $0x260] sm:$0xff]
      %v1829 = vld [vmem:[%s3 + $0x268] sm:$0xff]
      %v1830 = vld [vmem:[%s3 + $0x270] sm:$0xff]
      %v1831 = vld [vmem:[%s3 + $0x278] sm:$0xff]
      %v1832 = vld [vmem:[%s3 + $0x280] sm:$0xff]
      %v1833 = vld [vmem:[%s3 + $0x288] sm:$0xff]
      %v1834 = vld [vmem:[%s3 + $0x290] sm:$0xff]
      %v1835 = vld [vmem:[%s3 + $0x298] sm:$0xff]
      %v1836 = vld [vmem:[%s3 + $0x2a0] sm:$0xff]
      %v1837 = vld [vmem:[%s3 + $0x2a8] sm:$0xff]
      %v1838 = vld [vmem:[%s3 + $0x2b0] sm:$0xff]
      %v1839 = vld [vmem:[%s3 + $0x2b8] sm:$0xff]
      %v1840 = vld [vmem:[%s3 + $0x2c0] sm:$0xff]
      %v1841 = vld [vmem:[%s3 + $0x2c8] sm:$0xff]
      %v1842 = vld [vmem:[%s3 + $0x2d0] sm:$0xff]
      %v1843 = vld [vmem:[%s3 + $0x2d8] sm:$0xff]
      %v1844 = vld [vmem:[%s3 + $0x2e0] sm:$0xff]
      %v1845 = vld [vmem:[%s3 + $0x2e8] sm:$0xff]
      %v1846 = vld [vmem:[%s3 + $0x2f0] sm:$0xff]
      %v1847 = vld [vmem:[%s3 + $0x2f8] sm:$0xff]
      %v1848 = vld [vmem:[%s3 + $0x300] sm:$0xff]
      %v1849 = vld [vmem:[%s3 + $0x308] sm:$0xff]
      %v1850 = vld [vmem:[%s3 + $0x310] sm:$0xff]
      %v1851 = vld [vmem:[%s3 + $0x318] sm:$0xff]
      %v1852 = vld [vmem:[%s3 + $0x320] sm:$0xff]
      %v1853 = vld [vmem:[%s3 + $0x328] sm:$0xff]
      %v1854 = vld [vmem:[%s3 + $0x330] sm:$0xff]
      %v1855 = vld [vmem:[%s3 + $0x338] sm:$0xff]
      %v1856 = vld [vmem:[%s3 + $0x340] sm:$0xff]
      %v1857 = vld [vmem:[%s3 + $0x348] sm:$0xff]
      %v1858 = vld [vmem:[%s3 + $0x350] sm:$0xff]
      %v1859 = vld [vmem:[%s3 + $0x358] sm:$0xff]
      %v1860 = vld [vmem:[%s3 + $0x360] sm:$0xff]
      %v1861 = vld [vmem:[%s3 + $0x368] sm:$0xff]
      %v1862 = vld [vmem:[%s3 + $0x370] sm:$0xff]
      %v1863 = vld [vmem:[%s3 + $0x378] sm:$0xff]
      %v1864 = vld [vmem:[%s3 + $0x380] sm:$0xff]
      %v1865 = vld [vmem:[%s3 + $0x388] sm:$0xff]
      %v1866 = vld [vmem:[%s3 + $0x390] sm:$0xff]
      %v1867 = vld [vmem:[%s3 + $0x398] sm:$0xff]
      %v1868 = vld [vmem:[%s3 + $0x3a0] sm:$0xff]
      %v1869 = vld [vmem:[%s3 + $0x3a8] sm:$0xff]
      %v1870 = vld [vmem:[%s3 + $0x3b0] sm:$0xff]
      %v1871 = vld [vmem:[%s3 + $0x3b8] sm:$0xff]
      %v1872 = vld [vmem:[%s3 + $0x3c0] sm:$0xff]
      %v1873 = vld [vmem:[%s3 + $0x3c8] sm:$0xff]
      %v1874 = vld [vmem:[%s3 + $0x3d0] sm:$0xff]
      %v1875 = vld [vmem:[%s3 + $0x3d8] sm:$0xff]
      %v1876 = vld [vmem:[%s3 + $0x3e0] sm:$0xff]
      %v1877 = vld [vmem:[%s3 + $0x3e8] sm:$0xff]
      %v1878 = vld [vmem:[%s3 + $0x3f0] sm:$0xff]
      %v1879 = vld [vmem:[%s3 + $0x3f8] sm:$0xff]
      %v1880 = vld [vmem:[%s3 + $0x400] sm:$0xff]
      %v1881 = vld [vmem:[%s3 + $0x408] sm:$0xff]
      %v1882 = vld [vmem:[%s3 + $0x410] sm:$0xff]
      %v1883 = vld [vmem:[%s3 + $0x418] sm:$0xff]
      %v1884 = vld [vmem:[%s3 + $0x420] sm:$0xff]
      %v1885 = vld [vmem:[%s3 + $0x428] sm:$0xff]
      %v1886 = vld [vmem:[%s3 + $0x430] sm:$0xff]
      %v1887 = vld [vmem:[%s3 + $0x438] sm:$0xff]
      %v1888 = vld [vmem:[%s3 + $0x440] sm:$0xff]
      %v1889 = vld [vmem:[%s3 + $0x448] sm:$0xff]
      %v1890 = vld [vmem:[%s3 + $0x450] sm:$0xff]
      %v1891 = vld [vmem:[%s3 + $0x458] sm:$0xff]
      %v1892 = vld [vmem:[%s3 + $0x460] sm:$0xff]
      %v1893 = vld [vmem:[%s3 + $0x468] sm:$0xff]
      %v1894 = vld [vmem:[%s3 + $0x470] sm:$0xff]
      %v1895 = vld [vmem:[%s3 + $0x478] sm:$0xff]
      %v1896 = vld [vmem:[%s3 + $0x480] sm:$0xff]
      %v1897 = vld [vmem:[%s3 + $0x488] sm:$0xff]
      %v1898 = vld [vmem:[%s3 + $0x490] sm:$0xff]
      %v1899 = vld [vmem:[%s3 + $0x498] sm:$0xff]
      %v1900 = vld [vmem:[%s3 + $0x4a0] sm:$0xff]
      %v1901 = vld [vmem:[%s3 + $0x4a8] sm:$0xff]
      %v1902 = vld [vmem:[%s3 + $0x4b0] sm:$0xff]
      %v1903 = vld [vmem:[%s3 + $0x4b8] sm:$0xff]
      %v1904 = vld [vmem:[%s3 + $0x4c0] sm:$0xff]
      %v1905 = vld [vmem:[%s3 + $0x4c8] sm:$0xff]
      %v1906 = vld [vmem:[%s3 + $0x4d0] sm:$0xff]
      %v1907 = vld [vmem:[%s3 + $0x4d8] sm:$0xff]
      %v1908 = vld [vmem:[%s3 + $0x4e0] sm:$0xff]
      %v1909 = vld [vmem:[%s3 + $0x4e8] sm:$0xff]
      %v1910 = vld [vmem:[%s3 + $0x4f0] sm:$0xff]
      %v1911 = vld [vmem:[%s3 + $0x4f8] sm:$0xff]
      %v1912 = vld [vmem:[%s3 + $0x500] sm:$0xff]
      %v1913 = vld [vmem:[%s3 + $0x508] sm:$0xff]
      %v1914 = vld [vmem:[%s3 + $0x510] sm:$0xff]
      %v1915 = vld [vmem:[%s3 + $0x518] sm:$0xff]
      %v1916 = vld [vmem:[%s3 + $0x520] sm:$0xff]
      %v1917 = vld [vmem:[%s3 + $0x528] sm:$0xff]
      %v1918 = vld [vmem:[%s3 + $0x530] sm:$0xff]
      %v1919 = vld [vmem:[%s3 + $0x538] sm:$0xff]
      %v1920 = vld [vmem:[%s3 + $0x540] sm:$0xff]
      %v1921 = vld [vmem:[%s3 + $0x548] sm:$0xff]
      %v1922 = vld [vmem:[%s3 + $0x550] sm:$0xff]
      %v1923 = vld [vmem:[%s3 + $0x558] sm:$0xff]
      %v1924 = vld [vmem:[%s3 + $0x560] sm:$0xff]
      %v1925 = vld [vmem:[%s3 + $0x568] sm:$0xff]
      %v1926 = vld [vmem:[%s3 + $0x570] sm:$0xff]
      %v1927 = vld [vmem:[%s3 + $0x578] sm:$0xff]
      %v1928 = vld [vmem:[%s3 + $0x580] sm:$0xff]
      %v1929 = vld [vmem:[%s3 + $0x588] sm:$0xff]
      %v1930 = vld [vmem:[%s3 + $0x590] sm:$0xff]
      %v1931 = vld [vmem:[%s3 + $0x598] sm:$0xff]
      %v1932 = vld [vmem:[%s3 + $0x5a0] sm:$0xff]
      %v1933 = vld [vmem:[%s3 + $0x5a8] sm:$0xff]
      %v1934 = vld [vmem:[%s3 + $0x5b0] sm:$0xff]
      %v1935 = vld [vmem:[%s3 + $0x5b8] sm:$0xff]
      %v1936 = vld [vmem:[%s3 + $0x5c0] sm:$0xff]
      %v1937 = vld [vmem:[%s3 + $0x5c8] sm:$0xff]
      %v1938 = vld [vmem:[%s3 + $0x5d0] sm:$0xff]
      %v1939 = vld [vmem:[%s3 + $0x5d8] sm:$0xff]
      %v1940 = vld [vmem:[%s3 + $0x5e0] sm:$0xff]
      %v1941 = vld [vmem:[%s3 + $0x5e8] sm:$0xff]
      %v1942 = vld [vmem:[%s3 + $0x5f0] sm:$0xff]
      %v1943 = vld [vmem:[%s3 + $0x5f8] sm:$0xff]
      %v2136 = vunpack.c.l.b16 %v1752
      %v2137 = vunpack.c.h.b16 %v1752
      %v2138 = vunpack.c.l.b16 %v1753
      %v2139 = vunpack.c.h.b16 %v1753
      %v2140 = vunpack.c.l.b16 %v1754
      %v2141 = vunpack.c.h.b16 %v1754
      %v2142 = vunpack.c.l.b16 %v1755
      %v2143 = vunpack.c.h.b16 %v1755
      %v2144 = vunpack.c.l.b16 %v1756
      %v2145 = vunpack.c.h.b16 %v1756
      %v2146 = vunpack.c.l.b16 %v1757
      %v2147 = vunpack.c.h.b16 %v1757
      %v2148 = vunpack.c.l.b16 %v1758
      %v2149 = vunpack.c.h.b16 %v1758
      %v2150 = vunpack.c.l.b16 %v1759
      %v2151 = vunpack.c.h.b16 %v1759
      %v2152 = vunpack.c.l.b16 %v1760
      %v2153 = vunpack.c.h.b16 %v1760
      %v2154 = vunpack.c.l.b16 %v1761
      %v2155 = vunpack.c.h.b16 %v1761
      %v2156 = vunpack.c.l.b16 %v1762
      %v2157 = vunpack.c.h.b16 %v1762
      %v2158 = vunpack.c.l.b16 %v1763
      %v2159 = vunpack.c.h.b16 %v1763
      %v2160 = vunpack.c.l.b16 %v1764
      %v2161 = vunpack.c.h.b16 %v1764
      %v2162 = vunpack.c.l.b16 %v1765
      %v2163 = vunpack.c.h.b16 %v1765
      %v2164 = vunpack.c.l.b16 %v1766
      %v2165 = vunpack.c.h.b16 %v1766
      %v2166 = vunpack.c.l.b16 %v1767
      %v2167 = vunpack.c.h.b16 %v1767
      %v2168 = vunpack.c.l.b16 %v1768
      %v2169 = vunpack.c.h.b16 %v1768
      %v2170 = vunpack.c.l.b16 %v1769
      %v2171 = vunpack.c.h.b16 %v1769
      %v2172 = vunpack.c.l.b16 %v1770
      %v2173 = vunpack.c.h.b16 %v1770
      %v2174 = vunpack.c.l.b16 %v1771
      %v2175 = vunpack.c.h.b16 %v1771
      %v2176 = vunpack.c.l.b16 %v1772
      %v2177 = vunpack.c.h.b16 %v1772
      %v2178 = vunpack.c.l.b16 %v1773
      %v2179 = vunpack.c.h.b16 %v1773
      %v2180 = vunpack.c.l.b16 %v1774
      %v2181 = vunpack.c.h.b16 %v1774
      %v2182 = vunpack.c.l.b16 %v1775
      %v2183 = vunpack.c.h.b16 %v1775
      %v2184 = vunpack.c.l.b16 %v1776
      %v2185 = vunpack.c.h.b16 %v1776
      %v2186 = vunpack.c.l.b16 %v1777
      %v2187 = vunpack.c.h.b16 %v1777
      %v2188 = vunpack.c.l.b16 %v1778
      %v2189 = vunpack.c.h.b16 %v1778
      %v2190 = vunpack.c.l.b16 %v1779
      %v2191 = vunpack.c.h.b16 %v1779
      %v2192 = vunpack.c.l.b16 %v1780
      %v2193 = vunpack.c.h.b16 %v1780
      %v2194 = vunpack.c.l.b16 %v1781
      %v2195 = vunpack.c.h.b16 %v1781
      %v2196 = vunpack.c.l.b16 %v1782
      %v2197 = vunpack.c.h.b16 %v1782
      %v2198 = vunpack.c.l.b16 %v1783
      %v2199 = vunpack.c.h.b16 %v1783
      %v2200 = vunpack.c.l.b16 %v1784
      %v2201 = vunpack.c.h.b16 %v1784
      %v2202 = vunpack.c.l.b16 %v1785
      %v2203 = vunpack.c.h.b16 %v1785
      %v2204 = vunpack.c.l.b16 %v1786
      %v2205 = vunpack.c.h.b16 %v1786
      %v2206 = vunpack.c.l.b16 %v1787
      %v2207 = vunpack.c.h.b16 %v1787
      %v2208 = vunpack.c.l.b16 %v1788
      %v2209 = vunpack.c.h.b16 %v1788
      %v2210 = vunpack.c.l.b16 %v1789
      %v2211 = vunpack.c.h.b16 %v1789
      %v2212 = vunpack.c.l.b16 %v1790
      %v2213 = vunpack.c.h.b16 %v1790
      %v2214 = vunpack.c.l.b16 %v1791
      %v2215 = vunpack.c.h.b16 %v1791
      %v2216 = vunpack.c.l.b16 %v1792
      %v2217 = vunpack.c.h.b16 %v1792
      %v2218 = vunpack.c.l.b16 %v1793
      %v2219 = vunpack.c.h.b16 %v1793
      %v2220 = vunpack.c.l.b16 %v1794
      %v2221 = vunpack.c.h.b16 %v1794
      %v2222 = vunpack.c.l.b16 %v1795
      %v2223 = vunpack.c.h.b16 %v1795
      %v2224 = vunpack.c.l.b16 %v1796
      %v2225 = vunpack.c.h.b16 %v1796
      %v2226 = vunpack.c.l.b16 %v1797
      %v2227 = vunpack.c.h.b16 %v1797
      %v2228 = vunpack.c.l.b16 %v1798
      %v2229 = vunpack.c.h.b16 %v1798
      %v2230 = vunpack.c.l.b16 %v1799
      %v2231 = vunpack.c.h.b16 %v1799
      %v2232 = vunpack.c.l.b16 %v1800
      %v2233 = vunpack.c.h.b16 %v1800
      %v2234 = vunpack.c.l.b16 %v1801
      %v2235 = vunpack.c.h.b16 %v1801
      %v2236 = vunpack.c.l.b16 %v1802
      %v2237 = vunpack.c.h.b16 %v1802
      %v2238 = vunpack.c.l.b16 %v1803
      %v2239 = vunpack.c.h.b16 %v1803
      %v2240 = vunpack.c.l.b16 %v1804
      %v2241 = vunpack.c.h.b16 %v1804
      %v2242 = vunpack.c.l.b16 %v1805
      %v2243 = vunpack.c.h.b16 %v1805
      %v2244 = vunpack.c.l.b16 %v1806
      %v2245 = vunpack.c.h.b16 %v1806
      %v2246 = vunpack.c.l.b16 %v1807
      %v2247 = vunpack.c.h.b16 %v1807
      %v2248 = vunpack.c.l.b16 %v1808
      %v2249 = vunpack.c.h.b16 %v1808
      %v2250 = vunpack.c.l.b16 %v1809
      %v2251 = vunpack.c.h.b16 %v1809
      %v2252 = vunpack.c.l.b16 %v1810
      %v2253 = vunpack.c.h.b16 %v1810
      %v2254 = vunpack.c.l.b16 %v1811
      %v2255 = vunpack.c.h.b16 %v1811
      %v2256 = vunpack.c.l.b16 %v1812
      %v2257 = vunpack.c.h.b16 %v1812
      %v2258 = vunpack.c.l.b16 %v1813
      %v2259 = vunpack.c.h.b16 %v1813
      %v2260 = vunpack.c.l.b16 %v1814
      %v2261 = vunpack.c.h.b16 %v1814
      %v2262 = vunpack.c.l.b16 %v1815
      %v2263 = vunpack.c.h.b16 %v1815
      %v2264 = vunpack.c.l.b16 %v1816
      %v2265 = vunpack.c.h.b16 %v1816
      %v2266 = vunpack.c.l.b16 %v1817
      %v2267 = vunpack.c.h.b16 %v1817
      %v2268 = vunpack.c.l.b16 %v1818
      %v2269 = vunpack.c.h.b16 %v1818
      %v2270 = vunpack.c.l.b16 %v1819
      %v2271 = vunpack.c.h.b16 %v1819
      %v2272 = vunpack.c.l.b16 %v1820
      %v2273 = vunpack.c.h.b16 %v1820
      %v2274 = vunpack.c.l.b16 %v1821
      %v2275 = vunpack.c.h.b16 %v1821
      %v2276 = vunpack.c.l.b16 %v1822
      %v2277 = vunpack.c.h.b16 %v1822
      %v2278 = vunpack.c.l.b16 %v1823
      %v2279 = vunpack.c.h.b16 %v1823
      %v2280 = vunpack.c.l.b16 %v1824
      %v2281 = vunpack.c.h.b16 %v1824
      %v2282 = vunpack.c.l.b16 %v1825
      %v2283 = vunpack.c.h.b16 %v1825
      %v2284 = vunpack.c.l.b16 %v1826
      %v2285 = vunpack.c.h.b16 %v1826
      %v2286 = vunpack.c.l.b16 %v1827
      %v2287 = vunpack.c.h.b16 %v1827
      %v2288 = vunpack.c.l.b16 %v1828
      %v2289 = vunpack.c.h.b16 %v1828
      %v2290 = vunpack.c.l.b16 %v1829
      %v2291 = vunpack.c.h.b16 %v1829
      %v2292 = vunpack.c.l.b16 %v1830
      %v2293 = vunpack.c.h.b16 %v1830
      %v2294 = vunpack.c.l.b16 %v1831
      %v2295 = vunpack.c.h.b16 %v1831
      %v2296 = vunpack.c.l.b16 %v1832
      %v2297 = vunpack.c.h.b16 %v1832
      %v2298 = vunpack.c.l.b16 %v1833
      %v2299 = vunpack.c.h.b16 %v1833
      %v2300 = vunpack.c.l.b16 %v1834
      %v2301 = vunpack.c.h.b16 %v1834
      %v2302 = vunpack.c.l.b16 %v1835
      %v2303 = vunpack.c.h.b16 %v1835
      %v2304 = vunpack.c.l.b16 %v1836
      %v2305 = vunpack.c.h.b16 %v1836
      %v2306 = vunpack.c.l.b16 %v1837
      %v2307 = vunpack.c.h.b16 %v1837
      %v2308 = vunpack.c.l.b16 %v1838
      %v2309 = vunpack.c.h.b16 %v1838
      %v2310 = vunpack.c.l.b16 %v1839
      %v2311 = vunpack.c.h.b16 %v1839
      %v2312 = vunpack.c.l.b16 %v1840
      %v2313 = vunpack.c.h.b16 %v1840
      %v2314 = vunpack.c.l.b16 %v1841
      %v2315 = vunpack.c.h.b16 %v1841
      %v2316 = vunpack.c.l.b16 %v1842
      %v2317 = vunpack.c.h.b16 %v1842
      %v2318 = vunpack.c.l.b16 %v1843
      %v2319 = vunpack.c.h.b16 %v1843
      %v2320 = vunpack.c.l.b16 %v1844
      %v2321 = vunpack.c.h.b16 %v1844
      %v2322 = vunpack.c.l.b16 %v1845
      %v2323 = vunpack.c.h.b16 %v1845
      %v2324 = vunpack.c.l.b16 %v1846
      %v2325 = vunpack.c.h.b16 %v1846
      %v2326 = vunpack.c.l.b16 %v1847
      %v2327 = vunpack.c.h.b16 %v1847
      %v2328 = vunpack.c.l.b16 %v1848
      %v2329 = vunpack.c.h.b16 %v1848
      %v2330 = vunpack.c.l.b16 %v1849
      %v2331 = vunpack.c.h.b16 %v1849
      %v2332 = vunpack.c.l.b16 %v1850
      %v2333 = vunpack.c.h.b16 %v1850
      %v2334 = vunpack.c.l.b16 %v1851
      %v2335 = vunpack.c.h.b16 %v1851
      %v2336 = vunpack.c.l.b16 %v1852
      %v2337 = vunpack.c.h.b16 %v1852
      %v2338 = vunpack.c.l.b16 %v1853
      %v2339 = vunpack.c.h.b16 %v1853
      %v2340 = vunpack.c.l.b16 %v1854
      %v2341 = vunpack.c.h.b16 %v1854
      %v2342 = vunpack.c.l.b16 %v1855
      %v2343 = vunpack.c.h.b16 %v1855
      %v2344 = vunpack.c.l.b16 %v1856
      %v2345 = vunpack.c.h.b16 %v1856
      %v2346 = vunpack.c.l.b16 %v1857
      %v2347 = vunpack.c.h.b16 %v1857
      %v2348 = vunpack.c.l.b16 %v1858
      %v2349 = vunpack.c.h.b16 %v1858
      %v2350 = vunpack.c.l.b16 %v1859
      %v2351 = vunpack.c.h.b16 %v1859
      %v2352 = vunpack.c.l.b16 %v1860
      %v2353 = vunpack.c.h.b16 %v1860
      %v2354 = vunpack.c.l.b16 %v1861
      %v2355 = vunpack.c.h.b16 %v1861
      %v2356 = vunpack.c.l.b16 %v1862
      %v2357 = vunpack.c.h.b16 %v1862
      %v2358 = vunpack.c.l.b16 %v1863
      %v2359 = vunpack.c.h.b16 %v1863
      %v2360 = vunpack.c.l.b16 %v1864
      %v2361 = vunpack.c.h.b16 %v1864
      %v2362 = vunpack.c.l.b16 %v1865
      %v2363 = vunpack.c.h.b16 %v1865
      %v2364 = vunpack.c.l.b16 %v1866
      %v2365 = vunpack.c.h.b16 %v1866
      %v2366 = vunpack.c.l.b16 %v1867
      %v2367 = vunpack.c.h.b16 %v1867
      %v2368 = vunpack.c.l.b16 %v1868
      %v2369 = vunpack.c.h.b16 %v1868
      %v2370 = vunpack.c.l.b16 %v1869
      %v2371 = vunpack.c.h.b16 %v1869
      %v2372 = vunpack.c.l.b16 %v1870
      %v2373 = vunpack.c.h.b16 %v1870
      %v2374 = vunpack.c.l.b16 %v1871
      %v2375 = vunpack.c.h.b16 %v1871
      %v2376 = vunpack.c.l.b16 %v1872
      %v2377 = vunpack.c.h.b16 %v1872
      %v2378 = vunpack.c.l.b16 %v1873
      %v2379 = vunpack.c.h.b16 %v1873
      %v2380 = vunpack.c.l.b16 %v1874
      %v2381 = vunpack.c.h.b16 %v1874
      %v2382 = vunpack.c.l.b16 %v1875
      %v2383 = vunpack.c.h.b16 %v1875
      %v2384 = vunpack.c.l.b16 %v1876
      %v2385 = vunpack.c.h.b16 %v1876
      %v2386 = vunpack.c.l.b16 %v1877
      %v2387 = vunpack.c.h.b16 %v1877
      %v2388 = vunpack.c.l.b16 %v1878
      %v2389 = vunpack.c.h.b16 %v1878
      %v2390 = vunpack.c.l.b16 %v1879
      %v2391 = vunpack.c.h.b16 %v1879
      %v2392 = vunpack.c.l.b16 %v1880
      %v2393 = vunpack.c.h.b16 %v1880
      %v2394 = vunpack.c.l.b16 %v1881
      %v2395 = vunpack.c.h.b16 %v1881
      %v2396 = vunpack.c.l.b16 %v1882
      %v2397 = vunpack.c.h.b16 %v1882
      %v2398 = vunpack.c.l.b16 %v1883
      %v2399 = vunpack.c.h.b16 %v1883
      %v2400 = vunpack.c.l.b16 %v1884
      %v2401 = vunpack.c.h.b16 %v1884
      %v2402 = vunpack.c.l.b16 %v1885
      %v2403 = vunpack.c.h.b16 %v1885
      %v2404 = vunpack.c.l.b16 %v1886
      %v2405 = vunpack.c.h.b16 %v1886
      %v2406 = vunpack.c.l.b16 %v1887
      %v2407 = vunpack.c.h.b16 %v1887
      %v2408 = vunpack.c.l.b16 %v1888
      %v2409 = vunpack.c.h.b16 %v1888
      %v2410 = vunpack.c.l.b16 %v1889
      %v2411 = vunpack.c.h.b16 %v1889
      %v2412 = vunpack.c.l.b16 %v1890
      %v2413 = vunpack.c.h.b16 %v1890
      %v2414 = vunpack.c.l.b16 %v1891
      %v2415 = vunpack.c.h.b16 %v1891
      %v2416 = vunpack.c.l.b16 %v1892
      %v2417 = vunpack.c.h.b16 %v1892
      %v2418 = vunpack.c.l.b16 %v1893
      %v2419 = vunpack.c.h.b16 %v1893
      %v2420 = vunpack.c.l.b16 %v1894
      %v2421 = vunpack.c.h.b16 %v1894
      %v2422 = vunpack.c.l.b16 %v1895
      %v2423 = vunpack.c.h.b16 %v1895
      %v2424 = vunpack.c.l.b16 %v1896
      %v2425 = vunpack.c.h.b16 %v1896
      %v2426 = vunpack.c.l.b16 %v1897
      %v2427 = vunpack.c.h.b16 %v1897
      %v2428 = vunpack.c.l.b16 %v1898
      %v2429 = vunpack.c.h.b16 %v1898
      %v2430 = vunpack.c.l.b16 %v1899
      %v2431 = vunpack.c.h.b16 %v1899
      %v2432 = vunpack.c.l.b16 %v1900
      %v2433 = vunpack.c.h.b16 %v1900
      %v2434 = vunpack.c.l.b16 %v1901
      %v2435 = vunpack.c.h.b16 %v1901
      %v2436 = vunpack.c.l.b16 %v1902
      %v2437 = vunpack.c.h.b16 %v1902
      %v2438 = vunpack.c.l.b16 %v1903
      %v2439 = vunpack.c.h.b16 %v1903
      %v2440 = vunpack.c.l.b16 %v1904
      %v2441 = vunpack.c.h.b16 %v1904
      %v2442 = vunpack.c.l.b16 %v1905
      %v2443 = vunpack.c.h.b16 %v1905
      %v2444 = vunpack.c.l.b16 %v1906
      %v2445 = vunpack.c.h.b16 %v1906
      %v2446 = vunpack.c.l.b16 %v1907
      %v2447 = vunpack.c.h.b16 %v1907
      %v2448 = vunpack.c.l.b16 %v1908
      %v2449 = vunpack.c.h.b16 %v1908
      %v2450 = vunpack.c.l.b16 %v1909
      %v2451 = vunpack.c.h.b16 %v1909
      %v2452 = vunpack.c.l.b16 %v1910
      %v2453 = vunpack.c.h.b16 %v1910
      %v2454 = vunpack.c.l.b16 %v1911
      %v2455 = vunpack.c.h.b16 %v1911
      %v2456 = vunpack.c.l.b16 %v1912
      %v2457 = vunpack.c.h.b16 %v1912
      %v2458 = vunpack.c.l.b16 %v1913
      %v2459 = vunpack.c.h.b16 %v1913
      %v2460 = vunpack.c.l.b16 %v1914
      %v2461 = vunpack.c.h.b16 %v1914
      %v2462 = vunpack.c.l.b16 %v1915
      %v2463 = vunpack.c.h.b16 %v1915
      %v2464 = vunpack.c.l.b16 %v1916
      %v2465 = vunpack.c.h.b16 %v1916
      %v2466 = vunpack.c.l.b16 %v1917
      %v2467 = vunpack.c.h.b16 %v1917
      %v2468 = vunpack.c.l.b16 %v1918
      %v2469 = vunpack.c.h.b16 %v1918
      %v2470 = vunpack.c.l.b16 %v1919
      %v2471 = vunpack.c.h.b16 %v1919
      %v2472 = vunpack.c.l.b16 %v1920
      %v2473 = vunpack.c.h.b16 %v1920
      %v2474 = vunpack.c.l.b16 %v1921
      %v2475 = vunpack.c.h.b16 %v1921
      %v2476 = vunpack.c.l.b16 %v1922
      %v2477 = vunpack.c.h.b16 %v1922
      %v2478 = vunpack.c.l.b16 %v1923
      %v2479 = vunpack.c.h.b16 %v1923
      %v2480 = vunpack.c.l.b16 %v1924
      %v2481 = vunpack.c.h.b16 %v1924
      %v2482 = vunpack.c.l.b16 %v1925
      %v2483 = vunpack.c.h.b16 %v1925
      %v2484 = vunpack.c.l.b16 %v1926
      %v2485 = vunpack.c.h.b16 %v1926
      %v2486 = vunpack.c.l.b16 %v1927
      %v2487 = vunpack.c.h.b16 %v1927
      %v2488 = vunpack.c.l.b16 %v1928
      %v2489 = vunpack.c.h.b16 %v1928
      %v2490 = vunpack.c.l.b16 %v1929
      %v2491 = vunpack.c.h.b16 %v1929
      %v2492 = vunpack.c.l.b16 %v1930
      %v2493 = vunpack.c.h.b16 %v1930
      %v2494 = vunpack.c.l.b16 %v1931
      %v2495 = vunpack.c.h.b16 %v1931
      %v2496 = vunpack.c.l.b16 %v1932
      %v2497 = vunpack.c.h.b16 %v1932
      %v2498 = vunpack.c.l.b16 %v1933
      %v2499 = vunpack.c.h.b16 %v1933
      %v2500 = vunpack.c.l.b16 %v1934
      %v2501 = vunpack.c.h.b16 %v1934
      %v2502 = vunpack.c.l.b16 %v1935
      %v2503 = vunpack.c.h.b16 %v1935
      %v2504 = vunpack.c.l.b16 %v1936
      %v2505 = vunpack.c.h.b16 %v1936
      %v2506 = vunpack.c.l.b16 %v1937
      %v2507 = vunpack.c.h.b16 %v1937
      %v2508 = vunpack.c.l.b16 %v1938
      %v2509 = vunpack.c.h.b16 %v1938
      %v2510 = vunpack.c.l.b16 %v1939
      %v2511 = vunpack.c.h.b16 %v1939
      %v2512 = vunpack.c.l.b16 %v1940
      %v2513 = vunpack.c.h.b16 %v1940
      %v2514 = vunpack.c.l.b16 %v1941
      %v2515 = vunpack.c.h.b16 %v1941
      %v2516 = vunpack.c.l.b16 %v1942
      %v2517 = vunpack.c.h.b16 %v1942
      %v2518 = vunpack.c.l.b16 %v1943
      %v2519 = vunpack.c.h.b16 %v1943
      %v2520 = vpack.c.b16 %v2140, %v2136
      %v2521 = vpack.c.b16 %v2141, %v2137
      %v2522 = vpack.c.b16 %v2142, %v2138
      %v2523 = vpack.c.b16 %v2143, %v2139
      %v2524 = vpack.c.b16 %v2148, %v2144
      %v2525 = vpack.c.b16 %v2149, %v2145
      %v2526 = vpack.c.b16 %v2150, %v2146
      %v2527 = vpack.c.b16 %v2151, %v2147
      %v2528 = vpack.c.b16 %v2156, %v2152
      %v2529 = vpack.c.b16 %v2157, %v2153
      %v2530 = vpack.c.b16 %v2158, %v2154
      %v2531 = vpack.c.b16 %v2159, %v2155
      %v2532 = vpack.c.b16 %v2164, %v2160
      %v2533 = vpack.c.b16 %v2165, %v2161
      %v2534 = vpack.c.b16 %v2166, %v2162
      %v2535 = vpack.c.b16 %v2167, %v2163
      %v2536 = vpack.c.b16 %v2172, %v2168
      %v2537 = vpack.c.b16 %v2173, %v2169
      %v2538 = vpack.c.b16 %v2174, %v2170
      %v2539 = vpack.c.b16 %v2175, %v2171
      %v2540 = vpack.c.b16 %v2180, %v2176
      %v2541 = vpack.c.b16 %v2181, %v2177
      %v2542 = vpack.c.b16 %v2182, %v2178
      %v2543 = vpack.c.b16 %v2183, %v2179
      %v2544 = vpack.c.b16 %v2188, %v2184
      %v2545 = vpack.c.b16 %v2189, %v2185
      %v2546 = vpack.c.b16 %v2190, %v2186
      %v2547 = vpack.c.b16 %v2191, %v2187
      %v2548 = vpack.c.b16 %v2196, %v2192
      %v2549 = vpack.c.b16 %v2197, %v2193
      %v2550 = vpack.c.b16 %v2198, %v2194
      %v2551 = vpack.c.b16 %v2199, %v2195
      %v2552 = vpack.c.b16 %v2204, %v2200
      %v2553 = vpack.c.b16 %v2205, %v2201
      %v2554 = vpack.c.b16 %v2206, %v2202
      %v2555 = vpack.c.b16 %v2207, %v2203
      %v2556 = vpack.c.b16 %v2212, %v2208
      %v2557 = vpack.c.b16 %v2213, %v2209
      %v2558 = vpack.c.b16 %v2214, %v2210
      %v2559 = vpack.c.b16 %v2215, %v2211
      %v2560 = vpack.c.b16 %v2220, %v2216
      %v2561 = vpack.c.b16 %v2221, %v2217
      %v2562 = vpack.c.b16 %v2222, %v2218
      %v2563 = vpack.c.b16 %v2223, %v2219
      %v2564 = vpack.c.b16 %v2228, %v2224
      %v2565 = vpack.c.b16 %v2229, %v2225
      %v2566 = vpack.c.b16 %v2230, %v2226
      %v2567 = vpack.c.b16 %v2231, %v2227
      %v2568 = vpack.c.b16 %v2236, %v2232
      %v2569 = vpack.c.b16 %v2237, %v2233
      %v2570 = vpack.c.b16 %v2238, %v2234
      %v2571 = vpack.c.b16 %v2239, %v2235
      %v2572 = vpack.c.b16 %v2244, %v2240
      %v2573 = vpack.c.b16 %v2245, %v2241
      %v2574 = vpack.c.b16 %v2246, %v2242
      %v2575 = vpack.c.b16 %v2247, %v2243
      %v2576 = vpack.c.b16 %v2252, %v2248
      %v2577 = vpack.c.b16 %v2253, %v2249
      %v2578 = vpack.c.b16 %v2254, %v2250
      %v2579 = vpack.c.b16 %v2255, %v2251
      %v2580 = vpack.c.b16 %v2260, %v2256
      %v2581 = vpack.c.b16 %v2261, %v2257
      %v2582 = vpack.c.b16 %v2262, %v2258
      %v2583 = vpack.c.b16 %v2263, %v2259
      %v2584 = vpack.c.b16 %v2268, %v2264
      %v2585 = vpack.c.b16 %v2269, %v2265
      %v2586 = vpack.c.b16 %v2270, %v2266
      %v2587 = vpack.c.b16 %v2271, %v2267
      %v2588 = vpack.c.b16 %v2276, %v2272
      %v2589 = vpack.c.b16 %v2277, %v2273
      %v2590 = vpack.c.b16 %v2278, %v2274
      %v2591 = vpack.c.b16 %v2279, %v2275
      %v2592 = vpack.c.b16 %v2284, %v2280
      %v2593 = vpack.c.b16 %v2285, %v2281
      %v2594 = vpack.c.b16 %v2286, %v2282
      %v2595 = vpack.c.b16 %v2287, %v2283
      %v2596 = vpack.c.b16 %v2292, %v2288
      %v2597 = vpack.c.b16 %v2293, %v2289
      %v2598 = vpack.c.b16 %v2294, %v2290
      %v2599 = vpack.c.b16 %v2295, %v2291
      %v2600 = vpack.c.b16 %v2300, %v2296
      %v2601 = vpack.c.b16 %v2301, %v2297
      %v2602 = vpack.c.b16 %v2302, %v2298
      %v2603 = vpack.c.b16 %v2303, %v2299
      %v2604 = vpack.c.b16 %v2308, %v2304
      %v2605 = vpack.c.b16 %v2309, %v2305
      %v2606 = vpack.c.b16 %v2310, %v2306
      %v2607 = vpack.c.b16 %v2311, %v2307
      %v2608 = vpack.c.b16 %v2316, %v2312
      %v2609 = vpack.c.b16 %v2317, %v2313
      %v2610 = vpack.c.b16 %v2318, %v2314
      %v2611 = vpack.c.b16 %v2319, %v2315
      %v2612 = vpack.c.b16 %v2324, %v2320
      %v2613 = vpack.c.b16 %v2325, %v2321
      %v2614 = vpack.c.b16 %v2326, %v2322
      %v2615 = vpack.c.b16 %v2327, %v2323
      %v2616 = vpack.c.b16 %v2332, %v2328
      %v2617 = vpack.c.b16 %v2333, %v2329
      %v2618 = vpack.c.b16 %v2334, %v2330
      %v2619 = vpack.c.b16 %v2335, %v2331
      %v2620 = vpack.c.b16 %v2340, %v2336
      %v2621 = vpack.c.b16 %v2341, %v2337
      %v2622 = vpack.c.b16 %v2342, %v2338
      %v2623 = vpack.c.b16 %v2343, %v2339
      %v2624 = vpack.c.b16 %v2348, %v2344
      %v2625 = vpack.c.b16 %v2349, %v2345
      %v2626 = vpack.c.b16 %v2350, %v2346
      %v2627 = vpack.c.b16 %v2351, %v2347
      %v2628 = vpack.c.b16 %v2356, %v2352
      %v2629 = vpack.c.b16 %v2357, %v2353
      %v2630 = vpack.c.b16 %v2358, %v2354
      %v2631 = vpack.c.b16 %v2359, %v2355
      %v2632 = vpack.c.b16 %v2364, %v2360
      %v2633 = vpack.c.b16 %v2365, %v2361
      %v2634 = vpack.c.b16 %v2366, %v2362
      %v2635 = vpack.c.b16 %v2367, %v2363
      %v2636 = vpack.c.b16 %v2372, %v2368
      %v2637 = vpack.c.b16 %v2373, %v2369
      %v2638 = vpack.c.b16 %v2374, %v2370
      %v2639 = vpack.c.b16 %v2375, %v2371
      %v2640 = vpack.c.b16 %v2380, %v2376
      %v2641 = vpack.c.b16 %v2381, %v2377
      %v2642 = vpack.c.b16 %v2382, %v2378
      %v2643 = vpack.c.b16 %v2383, %v2379
      %v2644 = vpack.c.b16 %v2388, %v2384
      %v2645 = vpack.c.b16 %v2389, %v2385
      %v2646 = vpack.c.b16 %v2390, %v2386
      %v2647 = vpack.c.b16 %v2391, %v2387
      %v2648 = vpack.c.b16 %v2396, %v2392
      %v2649 = vpack.c.b16 %v2397, %v2393
      %v2650 = vpack.c.b16 %v2398, %v2394
      %v2651 = vpack.c.b16 %v2399, %v2395
      %v2652 = vpack.c.b16 %v2404, %v2400
      %v2653 = vpack.c.b16 %v2405, %v2401
      %v2654 = vpack.c.b16 %v2406, %v2402
      %v2655 = vpack.c.b16 %v2407, %v2403
      %v2656 = vpack.c.b16 %v2412, %v2408
      %v2657 = vpack.c.b16 %v2413, %v2409
      %v2658 = vpack.c.b16 %v2414, %v2410
      %v2659 = vpack.c.b16 %v2415, %v2411
      %v2660 = vpack.c.b16 %v2420, %v2416
      %v2661 = vpack.c.b16 %v2421, %v2417
      %v2662 = vpack.c.b16 %v2422, %v2418
      %v2663 = vpack.c.b16 %v2423, %v2419
      %v2664 = vpack.c.b16 %v2428, %v2424
      %v2665 = vpack.c.b16 %v2429, %v2425
      %v2666 = vpack.c.b16 %v2430, %v2426
      %v2667 = vpack.c.b16 %v2431, %v2427
      %v2668 = vpack.c.b16 %v2436, %v2432
      %v2669 = vpack.c.b16 %v2437, %v2433
      %v2670 = vpack.c.b16 %v2438, %v2434
      %v2671 = vpack.c.b16 %v2439, %v2435
      %v2672 = vpack.c.b16 %v2444, %v2440
      %v2673 = vpack.c.b16 %v2445, %v2441
      %v2674 = vpack.c.b16 %v2446, %v2442
      %v2675 = vpack.c.b16 %v2447, %v2443
      %v2676 = vpack.c.b16 %v2452, %v2448
      %v2677 = vpack.c.b16 %v2453, %v2449
      %v2678 = vpack.c.b16 %v2454, %v2450
      %v2679 = vpack.c.b16 %v2455, %v2451
      %v2680 = vpack.c.b16 %v2460, %v2456
      %v2681 = vpack.c.b16 %v2461, %v2457
      %v2682 = vpack.c.b16 %v2462, %v2458
      %v2683 = vpack.c.b16 %v2463, %v2459
      %v2684 = vpack.c.b16 %v2468, %v2464
      %v2685 = vpack.c.b16 %v2469, %v2465
      %v2686 = vpack.c.b16 %v2470, %v2466
      %v2687 = vpack.c.b16 %v2471, %v2467
      %v2688 = vpack.c.b16 %v2476, %v2472
      %v2689 = vpack.c.b16 %v2477, %v2473
      %v2690 = vpack.c.b16 %v2478, %v2474
      %v2691 = vpack.c.b16 %v2479, %v2475
      %v2692 = vpack.c.b16 %v2484, %v2480
      %v2693 = vpack.c.b16 %v2485, %v2481
      %v2694 = vpack.c.b16 %v2486, %v2482
      %v2695 = vpack.c.b16 %v2487, %v2483
      %v2696 = vpack.c.b16 %v2492, %v2488
      %v2697 = vpack.c.b16 %v2493, %v2489
      %v2698 = vpack.c.b16 %v2494, %v2490
      %v2699 = vpack.c.b16 %v2495, %v2491
      %v2700 = vpack.c.b16 %v2500, %v2496
      %v2701 = vpack.c.b16 %v2501, %v2497
      %v2702 = vpack.c.b16 %v2502, %v2498
      %v2703 = vpack.c.b16 %v2503, %v2499
      %v2704 = vpack.c.b16 %v2508, %v2504
      %v2705 = vpack.c.b16 %v2509, %v2505
      %v2706 = vpack.c.b16 %v2510, %v2506
      %v2707 = vpack.c.b16 %v2511, %v2507
      %v2708 = vpack.c.b16 %v2516, %v2512
      %v2709 = vpack.c.b16 %v2517, %v2513
      %v2710 = vpack.c.b16 %v2518, %v2514
      %v2711 = vpack.c.b16 %v2519, %v2515
      %2904 = vmatprep.subr.bf16.mxu0 %v2521
      %2905 = vmatpush1.bf16.msra.mxu0 %v2520
      %2906 = vmatprep.subr.bf16.mxu0 %v2525
      %2907 = vmatpush1.bf16.msra.mxu0 %v2524
      %2908 = vmatprep.subr.bf16.mxu0 %v2529
      %2909 = vmatpush1.bf16.msra.mxu0 %v2528
      %2910 = vmatprep.subr.bf16.mxu0 %v2533
      %2911 = vmatpush1.bf16.msra.mxu0 %v2532
      %2912 = vmatprep.subr.bf16.mxu0 %v2537
      %2913 = vmatpush1.bf16.msra.mxu0 %v2536
      %2914 = vmatprep.subr.bf16.mxu0 %v2541
      %2915 = vmatpush1.bf16.msra.mxu0 %v2540
      %2916 = vmatprep.subr.bf16.mxu0 %v2545
      %2917 = vmatpush1.bf16.msra.mxu0 %v2544
      %2918 = vmatprep.subr.bf16.mxu0 %v2549
      %2919 = vmatpush1.bf16.msra.mxu0 %v2548
      %2920 = vmatprep.subr.bf16.mxu0 %v2553
      %2921 = vmatpush1.bf16.msra.mxu0 %v2552
      %2922 = vmatprep.subr.bf16.mxu0 %v2557
      %2923 = vmatpush1.bf16.msra.mxu0 %v2556
      %2924 = vmatprep.subr.bf16.mxu0 %v2561
      %2925 = vmatpush1.bf16.msra.mxu0 %v2560
      %2926 = vmatprep.subr.bf16.mxu0 %v2565
      %2927 = vmatpush1.bf16.msra.mxu0 %v2564
      %2928 = vmatprep.subr.bf16.mxu0 %v2569
      %2929 = vmatpush1.bf16.msra.mxu0 %v2568
      %2930 = vmatprep.subr.bf16.mxu0 %v2573
      %2931 = vmatpush1.bf16.msra.mxu0 %v2572
      %2932 = vmatprep.subr.bf16.mxu0 %v2577
      %2933 = vmatpush1.bf16.msra.mxu0 %v2576
      %2934 = vmatprep.subr.bf16.mxu0 %v2581
      %2935 = vmatpush1.bf16.msra.mxu0 %v2580
      %2936 = vmatprep.mubr.bf16.mxu0 %v1747
      %2937 = vmatmul.mubr.bf16.gmra.mrb[0].mxu0 %v1746
      %v2938 = vpop.f32.mrb[0].mxu0
      %v2939 = vadd.f32 0.0, %v2938
      %v2940 = vpop.f32.mrb[0].mxu0
      %v2941 = vadd.f32 0.0, %v2940
      %v2942 = vpop.f32.mrb[0].mxu0
      %v2943 = vadd.f32 0.0, %v2942
      %v2944 = vpop.f32.mrb[0].mxu0
      %v2945 = vadd.f32 0.0, %v2944
      %2946 = vdwg.mxu0
      %2947 = vmatprep.subr.bf16.mxu0 %v2585
      %2948 = vmatpush1.bf16.msra.mxu0 %v2584
      %2949 = vmatprep.subr.bf16.mxu0 %v2589
      %2950 = vmatpush1.bf16.msra.mxu0 %v2588
      %2951 = vmatprep.subr.bf16.mxu0 %v2593
      %2952 = vmatpush1.bf16.msra.mxu0 %v2592
      %2953 = vmatprep.subr.bf16.mxu0 %v2597
      %2954 = vmatpush1.bf16.msra.mxu0 %v2596
      %2955 = vmatprep.subr.bf16.mxu0 %v2601
      %2956 = vmatpush1.bf16.msra.mxu0 %v2600
      %2957 = vmatprep.subr.bf16.mxu0 %v2605
      %2958 = vmatpush1.bf16.msra.mxu0 %v2604
      %2959 = vmatprep.subr.bf16.mxu0 %v2609
      %2960 = vmatpush1.bf16.msra.mxu0 %v2608
      %2961 = vmatprep.subr.bf16.mxu0 %v2613
      %2962 = vmatpush1.bf16.msra.mxu0 %v2612
      %2963 = vmatprep.subr.bf16.mxu0 %v2617
      %2964 = vmatpush1.bf16.msra.mxu0 %v2616
      %2965 = vmatprep.subr.bf16.mxu0 %v2621
      %2966 = vmatpush1.bf16.msra.mxu0 %v2620
      %2967 = vmatprep.subr.bf16.mxu0 %v2625
      %2968 = vmatpush1.bf16.msra.mxu0 %v2624
      %2969 = vmatprep.subr.bf16.mxu0 %v2629
      %2970 = vmatpush1.bf16.msra.mxu0 %v2628
      %2971 = vmatprep.subr.bf16.mxu0 %v2633
      %2972 = vmatpush1.bf16.msra.mxu0 %v2632
      %2973 = vmatprep.subr.bf16.mxu0 %v2637
      %2974 = vmatpush1.bf16.msra.mxu0 %v2636
      %2975 = vmatprep.subr.bf16.mxu0 %v2641
      %2976 = vmatpush1.bf16.msra.mxu0 %v2640
      %2977 = vmatprep.subr.bf16.mxu0 %v2645
      %2978 = vmatpush1.bf16.msra.mxu0 %v2644
      %2979 = vmatprep.mubr.bf16.mxu0 %v1749
      %2980 = vmatmul.mubr.bf16.gmra.mrb[0].mxu0 %v1748
      %v2981 = vpop.f32.mrb[0].mxu0
      %v2982 = vadd.f32 %v2939, %v2981
      %v2983 = vpop.f32.mrb[0].mxu0
      %v2984 = vadd.f32 %v2941, %v2983
      %v2985 = vpop.f32.mrb[0].mxu0
      %v2986 = vadd.f32 %v2943, %v2985
      %v2987 = vpop.f32.mrb[0].mxu0
      %v2988 = vadd.f32 %v2945, %v2987
      %2989 = vdwg.mxu0
      %2990 = vmatprep.subr.bf16.mxu0 %v2649
      %2991 = vmatpush1.bf16.msra.mxu0 %v2648
      %2992 = vmatprep.subr.bf16.mxu0 %v2653
      %2993 = vmatpush1.bf16.msra.mxu0 %v2652
      %2994 = vmatprep.subr.bf16.mxu0 %v2657
      %2995 = vmatpush1.bf16.msra.mxu0 %v2656
      %2996 = vmatprep.subr.bf16.mxu0 %v2661
      %2997 = vmatpush1.bf16.msra.mxu0 %v2660
      %2998 = vmatprep.subr.bf16.mxu0 %v2665
      %2999 = vmatpush1.bf16.msra.mxu0 %v2664
      %3000 = vmatprep.subr.bf16.mxu0 %v2669
      %3001 = vmatpush1.bf16.msra.mxu0 %v2668
      %3002 = vmatprep.subr.bf16.mxu0 %v2673
      %3003 = vmatpush1.bf16.msra.mxu0 %v2672
      %3004 = vmatprep.subr.bf16.mxu0 %v2677
      %3005 = vmatpush1.bf16.msra.mxu0 %v2676
      %3006 = vmatprep.subr.bf16.mxu0 %v2681
      %3007 = vmatpush1.bf16.msra.mxu0 %v2680
      %3008 = vmatprep.subr.bf16.mxu0 %v2685
      %3009 = vmatpush1.bf16.msra.mxu0 %v2684
      %3010 = vmatprep.subr.bf16.mxu0 %v2689
      %3011 = vmatpush1.bf16.msra.mxu0 %v2688
      %3012 = vmatprep.subr.bf16.mxu0 %v2693
      %3013 = vmatpush1.bf16.msra.mxu0 %v2692
      %3014 = vmatprep.subr.bf16.mxu0 %v2697
      %3015 = vmatpush1.bf16.msra.mxu0 %v2696
      %3016 = vmatprep.subr.bf16.mxu0 %v2701
      %3017 = vmatpush1.bf16.msra.mxu0 %v2700
      %3018 = vmatprep.subr.bf16.mxu0 %v2705
      %3019 = vmatpush1.bf16.msra.mxu0 %v2704
      %3020 = vmatprep.subr.bf16.mxu0 %v2709
      %3021 = vmatpush1.bf16.msra.mxu0 %v2708
      %3022 = vmatprep.mubr.bf16.mxu0 %v1751
      %3023 = vmatmul.mubr.bf16.gmra.mrb[0].mxu0 %v1750
      %v3024 = vpop.f32.mrb[0].mxu0
      %v3025 = vadd.f32 %v2982, %v3024
      %v3026 = vpop.f32.mrb[0].mxu0
      %v3027 = vadd.f32 %v2984, %v3026
      %v3028 = vpop.f32.mrb[0].mxu0
      %v3029 = vadd.f32 %v2986, %v3028
      %v3030 = vpop.f32.mrb[0].mxu0
      %v3031 = vadd.f32 %v2988, %v3030
      %3032 = vdwg.mxu0
      %3033 = vmatprep.subr.bf16.mxu0 %v2523
      %3034 = vmatpush1.bf16.msra.mxu0 %v2522
      %3035 = vmatprep.subr.bf16.mxu0 %v2527
      %3036 = vmatpush1.bf16.msra.mxu0 %v2526
      %3037 = vmatprep.subr.bf16.mxu0 %v2531
      %3038 = vmatpush1.bf16.msra.mxu0 %v2530
      %3039 = vmatprep.subr.bf16.mxu0 %v2535
      %3040 = vmatpush1.bf16.msra.mxu0 %v2534
      %3041 = vmatprep.subr.bf16.mxu0 %v2539
      %3042 = vmatpush1.bf16.msra.mxu0 %v2538
      %3043 = vmatprep.subr.bf16.mxu0 %v2543
      %3044 = vmatpush1.bf16.msra.mxu0 %v2542
      %3045 = vmatprep.subr.bf16.mxu0 %v2547
      %3046 = vmatpush1.bf16.msra.mxu0 %v2546
      %3047 = vmatprep.subr.bf16.mxu0 %v2551
      %3048 = vmatpush1.bf16.msra.mxu0 %v2550
      %3049 = vmatprep.subr.bf16.mxu0 %v2555
      %3050 = vmatpush1.bf16.msra.mxu0 %v2554
      %3051 = vmatprep.subr.bf16.mxu0 %v2559
      %3052 = vmatpush1.bf16.msra.mxu0 %v2558
      %3053 = vmatprep.subr.bf16.mxu0 %v2563
      %3054 = vmatpush1.bf16.msra.mxu0 %v2562
      %3055 = vmatprep.subr.bf16.mxu0 %v2567
      %3056 = vmatpush1.bf16.msra.mxu0 %v2566
      %3057 = vmatprep.subr.bf16.mxu0 %v2571
      %3058 = vmatpush1.bf16.msra.mxu0 %v2570
      %3059 = vmatprep.subr.bf16.mxu0 %v2575
      %3060 = vmatpush1.bf16.msra.mxu0 %v2574
      %3061 = vmatprep.subr.bf16.mxu0 %v2579
      %3062 = vmatpush1.bf16.msra.mxu0 %v2578
      %3063 = vmatprep.subr.bf16.mxu0 %v2583
      %3064 = vmatpush1.bf16.msra.mxu0 %v2582
      %3065 = vmatprep.mubr.bf16.mxu0 %v1747
      %3066 = vmatmul.mubr.bf16.gmra.mrb[0].mxu0 %v1746
      %v3067 = vpop.f32.mrb[0].mxu0
      %v3068 = vadd.f32 0.0, %v3067
      %v3069 = vpop.f32.mrb[0].mxu0
      %v3070 = vadd.f32 0.0, %v3069
      %v3071 = vpop.f32.mrb[0].mxu0
      %v3072 = vadd.f32 0.0, %v3071
      %v3073 = vpop.f32.mrb[0].mxu0
      %v3074 = vadd.f32 0.0, %v3073
      %3075 = vdwg.mxu0
      %3076 = vmatprep.subr.bf16.mxu0 %v2587
      %3077 = vmatpush1.bf16.msra.mxu0 %v2586
      %3078 = vmatprep.subr.bf16.mxu0 %v2591
      %3079 = vmatpush1.bf16.msra.mxu0 %v2590
      %3080 = vmatprep.subr.bf16.mxu0 %v2595
      %3081 = vmatpush1.bf16.msra.mxu0 %v2594
      %3082 = vmatprep.subr.bf16.mxu0 %v2599
      %3083 = vmatpush1.bf16.msra.mxu0 %v2598
      %3084 = vmatprep.subr.bf16.mxu0 %v2603
      %3085 = vmatpush1.bf16.msra.mxu0 %v2602
      %3086 = vmatprep.subr.bf16.mxu0 %v2607
      %3087 = vmatpush1.bf16.msra.mxu0 %v2606
      %3088 = vmatprep.subr.bf16.mxu0 %v2611
      %3089 = vmatpush1.bf16.msra.mxu0 %v2610
      %3090 = vmatprep.subr.bf16.mxu0 %v2615
      %3091 = vmatpush1.bf16.msra.mxu0 %v2614
      %3092 = vmatprep.subr.bf16.mxu0 %v2619
      %3093 = vmatpush1.bf16.msra.mxu0 %v2618
      %3094 = vmatprep.subr.bf16.mxu0 %v2623
      %3095 = vmatpush1.bf16.msra.mxu0 %v2622
      %3096 = vmatprep.subr.bf16.mxu0 %v2627
      %3097 = vmatpush1.bf16.msra.mxu0 %v2626
      %3098 = vmatprep.subr.bf16.mxu0 %v2631
      %3099 = vmatpush1.bf16.msra.mxu0 %v2630
      %3100 = vmatprep.subr.bf16.mxu0 %v2635
      %3101 = vmatpush1.bf16.msra.mxu0 %v2634
      %3102 = vmatprep.subr.bf16.mxu0 %v2639
      %3103 = vmatpush1.bf16.msra.mxu0 %v2638
      %3104 = vmatprep.subr.bf16.mxu0 %v2643
      %3105 = vmatpush1.bf16.msra.mxu0 %v2642
      %3106 = vmatprep.subr.bf16.mxu0 %v2647
      %3107 = vmatpush1.bf16.msra.mxu0 %v2646
      %3108 = vmatprep.mubr.bf16.mxu0 %v1749
      %3109 = vmatmul.mubr.bf16.gmra.mrb[0].mxu0 %v1748
      %v3110 = vpop.f32.mrb[0].mxu0
      %v3111 = vadd.f32 %v3068, %v3110
      %v3112 = vpop.f32.mrb[0].mxu0
      %v3113 = vadd.f32 %v3070, %v3112
      %v3114 = vpop.f32.mrb[0].mxu0
      %v3115 = vadd.f32 %v3072, %v3114
      %v3116 = vpop.f32.mrb[0].mxu0
      %v3117 = vadd.f32 %v3074, %v3116
      %3118 = vdwg.mxu0
      %3119 = vmatprep.subr.bf16.mxu0 %v2651
      %3120 = vmatpush1.bf16.msra.mxu0 %v2650
      %3121 = vmatprep.subr.bf16.mxu0 %v2655
      %3122 = vmatpush1.bf16.msra.mxu0 %v2654
      %3123 = vmatprep.subr.bf16.mxu0 %v2659
      %3124 = vmatpush1.bf16.msra.mxu0 %v2658
      %3125 = vmatprep.subr.bf16.mxu0 %v2663
      %3126 = vmatpush1.bf16.msra.mxu0 %v2662
      %3127 = vmatprep.subr.bf16.mxu0 %v2667
      %3128 = vmatpush1.bf16.msra.mxu0 %v2666
      %3129 = vmatprep.subr.bf16.mxu0 %v2671
      %3130 = vmatpush1.bf16.msra.mxu0 %v2670
      %3131 = vmatprep.subr.bf16.mxu0 %v2675
      %3132 = vmatpush1.bf16.msra.mxu0 %v2674
      %3133 = vmatprep.subr.bf16.mxu0 %v2679
      %3134 = vmatpush1.bf16.msra.mxu0 %v2678
      %3135 = vmatprep.subr.bf16.mxu0 %v2683
      %3136 = vmatpush1.bf16.msra.mxu0 %v2682
      %3137 = vmatprep.subr.bf16.mxu0 %v2687
      %3138 = vmatpush1.bf16.msra.mxu0 %v2686
      %3139 = vmatprep.subr.bf16.mxu0 %v2691
      %3140 = vmatpush1.bf16.msra.mxu0 %v2690
      %3141 = vmatprep.subr.bf16.mxu0 %v2695
      %3142 = vmatpush1.bf16.msra.mxu0 %v2694
      %3143 = vmatprep.subr.bf16.mxu0 %v2699
      %3144 = vmatpush1.bf16.msra.mxu0 %v2698
      %3145 = vmatprep.subr.bf16.mxu0 %v2703
      %3146 = vmatpush1.bf16.msra.mxu0 %v2702
      %3147 = vmatprep.subr.bf16.mxu0 %v2707
      %3148 = vmatpush1.bf16.msra.mxu0 %v2706
      %3149 = vmatprep.subr.bf16.mxu0 %v2711
      %3150 = vmatpush1.bf16.msra.mxu0 %v2710
      %3151 = vmatprep.mubr.bf16.mxu0 %v1751
      %3152 = vmatmul.mubr.bf16.gmra.mrb[0].mxu0 %v1750
      %v3153 = vpop.f32.mrb[0].mxu0
      %v3154 = vadd.f32 %v3111, %v3153
      %v3155 = vpop.f32.mrb[0].mxu0
      %v3156 = vadd.f32 %v3113, %v3155
      %v3157 = vpop.f32.mrb[0].mxu0
      %v3158 = vadd.f32 %v3115, %v3157
      %v3159 = vpop.f32.mrb[0].mxu0
      %v3160 = vadd.f32 %v3117, %v3159
      %3161 = vdwg.mxu0
      %v3162 = vld [vmem:[#allocation2] sm:$0x3]
      %v3164 = vlaneseq
      %v3165 = vshrl.u32 %v3164, 7
      %v3166 = vsub.s32 0, %v3165
      %v3167 = vrot.slane %v3162, %v3166
      %v3168 = vlaneseq
      %v3169 = vshrl.u32 %v3168, 7
      %v3170 = vsub.s32 1, %v3169
      %v3171 = vrot.slane %v3162, %v3170
      %vm3178 = vcmask 1040384
      %v3179 = vrot.slane %v3154, 7
      %v3180 = vrot.slane %v3156, 7
      %v3181 = vrot.slane %v3158, 7
      %v3182 = vsel %vm3178, %v3179, %v3181
      %v3183 = vrot.slane %v3160, 7
      %v3184 = vsel %vm3178, %v3180, %v3183
      %v3189 = vsel %vm3178, %v3167, %v3179
      %v3190 = vsel %vm3178, %v3171, %v3180
      %v3191 = vcombine.high %v3158, %v3160
      %v3193 = vunpack.c.l.s4 1966171168
      %v3194 = vunpack.c.0.s8 %v3193
      %v3195 = vlaneseq
      %v3196 = vshrl.u32 %v3195, 7
      %v3197 = vsub.s32 %v3194, %v3196
      %v3198 = vrot.slane %v3191, %v3197
      %v3199 = vcombine.high %v3198, %v3198
      %v3201 = vunpack.c.l.s4 1966171168
      %v3202 = vunpack.c.0.s8 %v3201
      %v3203 = vlaneseq
      %v3204 = vshrl.u32 %v3203, 7
      %v3205 = vsub.s32 %v3202, %v3204
      %v3206 = vrot.slane %v3199, %v3205
      %v3207 = vcombine.high %v3206, %v3206
      %v3209 = vlaneseq
      %vm3210 = vcmp.ge.s32.totalorder %v3209, 0
      %vm3211 = vcmp.lt.s32.totalorder %v3209, 256
      %vm3212 = vmand %vm3210, %vm3211
      %3213 = vst.msk [vmem:[#allocation2] sm:$0x3] %vm3212, %v3207
      %s3214 = smul.u32 %s22, 16
      %v3215 = vlaneseq
      %v3216 = vshrl.u32 %v3215, 7
      %v3217 = vadd.s32 %v3216, 8
      %v3218 = vstv %s3214
      %v3219 = vadd.s32 %v3218, %v3216
      %v3220 = vadd.s32 %v3218, %v3217
      %vm3221 = vcmp.ge.s32.totalorder %v3219, 1
      %vm3222 = vcmp.ge.s32.totalorder %v3220, 1
      %vm3223 = vcmp.le.s32.totalorder %v3219, 8
      %vm3224 = vcmp.le.s32.totalorder %v3220, 8
      %vm3225 = vmand %vm3221, %vm3223
      %vm3226 = vmand %vm3222, %vm3224
      %v3227 = vadd.f32 %v3025, %v3189
      %v3228 = vadd.f32 %v3027, %v3190
      %v3229 = vadd.f32 %v3029, %v3182
      %v3230 = vadd.f32 %v3031, %v3184
      %v3231 = vsel %vm3225, 1, 0
      %v3232 = vsel %vm3226, 1, 0
      %vm3233 = vcmp.eq.s32.totalorder %v3231, 1
      %vm3234 = vcmp.eq.s32.totalorder %v3232, 1
      %v3235 = vsel %vm3233, %v3227, 0.0
      %v3236 = vsel %vm3233, %v3228, 0.0
      %v3237 = vsel %vm3234, %v3229, 0.0
      %v3238 = vsel %vm3234, %v3230, 0.0
      %v3239 = vld [vmem:[%s292] sm:$0xff]
      %v3240 = vld [vmem:[%s292 + $0x8] sm:$0xff]
      %v3241 = vld [vmem:[%s292 + $0x10] sm:$0xff]
      %v3242 = vld [vmem:[%s292 + $0x18] sm:$0xff]
      %v3243 = vsub.f32 %v3239, %v3235
      %v3244 = vsub.f32 %v3240, %v3236
      %v3245 = vsub.f32 %v3241, %v3237
      %v3246 = vsub.f32 %v3242, %v3238
      %v3247 = vld [vmem:[#allocation3] sm:$0x1]
      %v3248 = vmul.f32 %v3235, %v3235
      %v3249 = vmul.f32 %v3236, %v3236
      %v3250 = vmul.f32 %v3237, %v3237
      %v3251 = vmul.f32 %v3238, %v3238
      %v3252 = vadd.f32 %v3248, %v3249
      %v3253 = vadd.f32 %v3252, %v3250
      %v3254 = vadd.f32 %v3253, %v3251
      %3255 = vadd.xlane.f32.xlu0 %v3254
      %v3256 = vpop.xlane.xlu0 %3255
      %v3257 = vrot.slane %v3256, 4
      %v3258 = vadd.f32 %v3256, %v3257
      %v3259 = vrot.slane %v3258, 2
      %v3260 = vadd.f32 %v3258, %v3259
      %v3261 = vrot.slane %v3260, 1
      %v3262 = vadd.f32 %v3260, %v3261
      %s3263 = vtos %v3262
      %v3264 = vstv %s3263
      %v3265 = vadd.f32 %v3247, %v3264
      %vm3266 = vcmask 0
      %3267 = vst.msk [vmem:[#allocation3] sm:$0x1] %vm3266, %v3265
      %v3268 = vld [vmem:[#allocation4] sm:$0x1]
      %v3269 = vmul.f32 %v3243, %v3243
      %v3270 = vmul.f32 %v3244, %v3244
      %v3271 = vmul.f32 %v3245, %v3245
      %v3272 = vmul.f32 %v3246, %v3246
      %v3273 = vadd.f32 %v3269, %v3270
      %v3274 = vadd.f32 %v3273, %v3271
      %v3275 = vadd.f32 %v3274, %v3272
      %3276 = vadd.xlane.f32.xlu0 %v3275
      %v3277 = vpop.xlane.xlu0 %3276
      %v3278 = vrot.slane %v3277, 4
      %v3279 = vadd.f32 %v3277, %v3278
      %v3280 = vrot.slane %v3279, 2
      %v3281 = vadd.f32 %v3279, %v3280
      %v3282 = vrot.slane %v3281, 1
      %v3283 = vadd.f32 %v3281, %v3282
      %s3284 = vtos %v3283
      %v3285 = vstv %s3284
      %v3286 = vadd.f32 %v3268, %v3285
      %3287 = vst.msk [vmem:[#allocation4] sm:$0x1] %vm3266, %v3286
      // Predicated region
      $region41: #{_lambda_.1} parent=35 // pred_check
        %p3288 = pneg %p300
      $region42: #{_lambda_.1} parent=35 // pred_check_branch
        %3290 = sbr.rel (%p3288) target = $region44
      $region43: #{_lambda_.1} parent=35 // pred_region
        %v3291 = vld [vmem:[#allocation3] sm:$0x1]
        %3293 = vset.pattern.permute.xlu0 0
        %3294 = vperm.xlu0 %3293, %v3291
        %v3295 = vpop.permute.xlu0 %3294
        %v3297 = vlaneseq
        %v3298 = vshrl.u32 %v3297, 7
        %v3299 = vsub.s32 0, %v3298
        %v3300 = vrot.slane %v3295, %v3299
        %3301 = vst [vmem:[%s296] sm:$0x1] %v3300
        %v3302 = vld [vmem:[#allocation4] sm:$0x1]
        %3304 = vset.pattern.permute.xlu0 0
        %3305 = vperm.xlu0 %3304, %v3302
        %v3306 = vpop.permute.xlu0 %3305
        %v3308 = vlaneseq
        %v3309 = vshrl.u32 %v3308, 7
        %v3310 = vsub.s32 0, %v3309
        %v3311 = vrot.slane %v3306, %v3310
        %3312 = vst [vmem:[%s299] sm:$0x1] %v3311
      $region44: #{_lambda_.1} parent=35 // pred_fallthru
        _
      %p3313 = scmp.lt.s32.totalorder %s21, 1
      %s3314 = scalar_select %p3313, %s21, 1
      %s3315 = scalar_lea.vmem %s4, %s3314
      %p3316 = scmp.lt.s32.totalorder %s21, 1
      %s3317 = scalar_select %p3316, %s21, 1
      %s3318 = scalar_lea.vmem %s5, %s3317
      // Predicated region
      $region45: #{_lambda_.1} parent=35 // pred_check
        %p3319 = pneg %p145
      $region46: #{_lambda_.1} parent=35 // pred_check_branch
        %3321 = sbr.rel (%p3319) target = $region48
      $region47: #{_lambda_.1} parent=35 // pred_region
        _
      $region48: #{_lambda_.1} parent=35 // pred_fallthru
        _
      // Predicated region
      $region49: #{_lambda_.1} parent=35 // pred_check
        %p3322 = pneg %p171
      $region50: #{_lambda_.1} parent=35 // pred_check_branch
        %3324 = sbr.rel (%p3322) target = $region52
      $region51: #{_lambda_.1} parent=35 // pred_region
        _
      $region52: #{_lambda_.1} parent=35 // pred_fallthru
        _
    $region36: #{_lambda_.1} parent=5 // pred_fallthru
      _
    %p3325 = scmp.le.s32.totalorder 2, %s12
    // Predicated region
    $region53: #{_lambda_.1} parent=5 // pred_check
      %p3326 = pneg %p3325
    $region54: #{_lambda_.1} parent=5 // pred_check_branch
      %3328 = sbr.rel (%p3326) target = $region56
    $region55: #{_lambda_.1} parent=5 // pred_region
      %s3329 = ssub.s32 %s12, 2
      // Predicated region
      $region57: #{_lambda_.1} parent=55 // pred_check
        %p3330 = pneg %p151
      $region58: #{_lambda_.1} parent=55 // pred_check_branch
        %3332 = sbr.rel (%p3330) target = $region60
      $region59: #{_lambda_.1} parent=55 // pred_region
        %p3333 = scmp.lt.s32.totalorder %s23, 1
        %s3334 = scalar_select %p3333, %s23, 1
        %s3335 = scalar_lea.vmem %s4, %s3334
      $region60: #{_lambda_.1} parent=55 // pred_fallthru
        _
      // Predicated region
      $region61: #{_lambda_.1} parent=55 // pred_check
        %p3336 = pneg %p177
      $region62: #{_lambda_.1} parent=55 // pred_check_branch
        %3338 = sbr.rel (%p3336) target = $region64
      $region63: #{_lambda_.1} parent=55 // pred_region
        %p3339 = scmp.lt.s32.totalorder %s23, 1
        %s3340 = scalar_select %p3339, %s23, 1
        %s3341 = scalar_lea.vmem %s5, %s3340
      $region64: #{_lambda_.1} parent=55 // pred_fallthru
        _
    $region56: #{_lambda_.1} parent=5 // pred_fallthru
      _
  $region6: #{_lambda_.1} parent=0 // loop_footer
    %s16 = sadd.s32 1, %s12
  $region7: #{_lambda_.1} parent=0 // loop_footer_branch
    %11 = sbr.rel target = $region3
  $region8: #{_lambda_.1} parent=0 // loop_exit
    _

</llo_original>
